<compile_context>
chip_gen: v7x
topology: tpu7x:2x2x1
jax: 0.10.0
libtpu: 0.0.40
codegen_flags: <defaults>
</compile_context>

<pallas_src>
import jax
import jax.numpy as jnp
import numpy as np
from jax.experimental import pallas as pl
from jax.experimental.pallas import tpu as pltpu

EPS = 1e-5
LANES = 128
STAT_ROWS = 8          # sublane-padded rows for per-tile BN partial sums


# --------------------------------------------------------------------------- #
# small helpers
# --------------------------------------------------------------------------- #
def _round_up(v, m):
    return (v + m - 1) // m * m


def _pick_tile(total, cap):
    """Largest divisor of `total` that is <= cap (at least 1)."""
    cap = max(1, min(cap, total))
    for t in range(cap, 0, -1):
        if total % t == 0:
            return t
    return 1


def _pad_last(a, target):
    pad = target - a.shape[-1]
    if pad == 0:
        return a
    widths = [(0, 0)] * (a.ndim - 1) + [(0, pad)]
    return jnp.pad(a, widths)


def _pad_rows(a, target):
    pad = target - a.shape[0]
    if pad == 0:
        return a
    return jnp.pad(a, ((0, pad),) + ((0, 0),) * (a.ndim - 1))


def _pad_2d(a, rows, cols):
    return jnp.pad(a, ((0, rows - a.shape[0]), (0, cols - a.shape[1])))


def _vmem_limit_bytes():
    """Per-generation scoped-VMEM limit with headroom (v7x has only 64 MiB)."""
    try:
        cap = pltpu.get_tpu_info().vmem_capacity_bytes
        return int(max(32 * 1024 * 1024, min(cap * 3 // 4, 96 * 1024 * 1024)))
    except Exception:
        return 48 * 1024 * 1024


def _im2col_3x3(x_nhwc, stride, Ho, Wo):
    """3x3/pad=1 im2col (wrapper-side layout plumbing), tap order (kh,kw,cin)."""
    N, H, W, C = x_nhwc.shape
    xp = jnp.pad(x_nhwc, ((0, 0), (1, 1), (1, 1), (0, 0)))
    cols = []
    for kh in range(3):
        for kw in range(3):
            cols.append(xp[:, kh:kh + (Ho - 1) * stride + 1:stride,
                              kw:kw + (Wo - 1) * stride + 1:stride, :])
    p = jnp.concatenate(cols, axis=-1)                      # (N, Ho, Wo, 9*C)
    return p.reshape(N * Ho * Wo, 9 * C)


def _fold_bn(s, q, gamma, beta, count):
    """Train-mode BN (biased variance) folded into one (1,Cp) scale/shift."""
    mean = s / count
    var = jnp.maximum(q / count - mean * mean, 0.0)   # guard f32 cancellation
    scale = gamma * jax.lax.rsqrt(var + EPS)
    shift = beta - mean * scale
    return scale.reshape(1, -1), shift.reshape(1, -1)


# --------------------------------------------------------------------------- #
# pass A: conv1 matmul (+ projection-shortcut matmul) with per-tile BN sums
# --------------------------------------------------------------------------- #
def _make_pass_a_kernel(has_proj):
    def kernel(*refs):
        if has_proj:
            p1_ref, w1_ref, xs_ref, wsc_ref, acc1_ref, accs_ref, stats_ref = refs
        else:
            p1_ref, w1_ref, acc1_ref, stats_ref = refs

        a1 = jnp.dot(p1_ref[...], w1_ref[...],
                     preferred_element_type=jnp.float32)            # (TM, Cp)
        acc1_ref[...] = a1
        s1 = jnp.sum(a1, axis=0, keepdims=True)
        q1 = jnp.sum(a1 * a1, axis=0, keepdims=True)
        z = jnp.zeros_like(s1)
        if has_proj:
            asc = jnp.dot(xs_ref[...], wsc_ref[...],
                          preferred_element_type=jnp.float32)
            accs_ref[...] = asc
            ss = jnp.sum(asc, axis=0, keepdims=True)
            qs = jnp.sum(asc * asc, axis=0, keepdims=True)
            stats = jnp.concatenate([s1, q1, ss, qs, z, z, z, z], axis=0)
        else:
            stats = jnp.concatenate([s1, q1, z, z, z, z, z, z], axis=0)
        stats_ref[...] = stats.reshape(1, STAT_ROWS, stats.shape[-1])
    return kernel


# --------------------------------------------------------------------------- #
# pass B: bn1+relu, conv2 as 9 accumulated K=Cp dots, per-tile BN2 sums
# --------------------------------------------------------------------------- #
def _make_pass_b_kernel(TB, Ho, Wo, Wp, Cp):
    M_tile = TB * Ho * Wo

    def kernel(a1_ref, sc1_ref, sh1_ref, w2_ref, acc2_ref, stats_ref, pad_ref):
        # bn1 + relu (f32 math), cast to bf16 into the halo scratch interior.
        h1 = jnp.maximum(a1_ref[...] * sc1_ref[...] + sh1_ref[...], 0.0)

        # Thin halo-zeroing stores every step (megacore-safe; scratch is not
        # guaranteed zero and persists per core, not per grid).
        pad_ref[:, 0:1, :, :] = jnp.zeros((TB, 1, Wp, Cp), jnp.bfloat16)
        pad_ref[:, Ho + 1:Ho + 2, :, :] = jnp.zeros((TB, 1, Wp, Cp), jnp.bfloat16)
        pad_ref[:, :, 0:1, :] = jnp.zeros((TB, Ho + 2, 1, Cp), jnp.bfloat16)
        pad_ref[:, :, Wo + 1:Wo + 2, :] = jnp.zeros((TB, Ho + 2, 1, Cp), jnp.bfloat16)
        pad_ref[:, 1:Ho + 1, 1:Wo + 1, :] = h1.astype(jnp.bfloat16)

        # conv2: 9 accumulated MXU dots (no materialized (M, 9*Cp) im2col).
        acc = None
        for kh in range(3):
            for kw in range(3):
                tap = kh * 3 + kw
                win = pad_ref[:, kh:kh + Ho, kw:kw + Wo, :].reshape(M_tile, Cp)
                d = jnp.dot(win, w2_ref[tap],
                            preferred_element_type=jnp.float32)
                acc = d if acc is None else acc + d

        acc2_ref[...] = acc.reshape(TB, Ho * Wo, Cp)
        s2 = jnp.sum(acc, axis=0, keepdims=True)
        q2 = jnp.sum(acc * acc, axis=0, keepdims=True)
        z = jnp.zeros_like(s2)
        stats = jnp.concatenate([s2, q2, z, z, z, z, z, z], axis=0)
        stats_ref[...] = stats.reshape(1, STAT_ROWS, Cp)
    return kernel


# --------------------------------------------------------------------------- #
# pass C: bn2 apply + shortcut add + relu (elementwise)
# --------------------------------------------------------------------------- #
def _make_pass_c_kernel(has_proj):
    def kernel(*refs):
        if has_proj:
            acc2_ref, accs_ref, s2_ref, h2_ref, ss_ref, hs_ref, o_ref = refs
            sc = accs_ref[...] * ss_ref[...] + hs_ref[...]
        else:
            acc2_ref, xs_ref, s2_ref, h2_ref, o_ref = refs
            sc = xs_ref[...].astype(jnp.float32)      # identity path fed bf16
        y = acc2_ref[...] * s2_ref[...] + h2_ref[...]
        o_ref[...] = jnp.maximum(y + sc, 0.0)
    return kernel


# --------------------------------------------------------------------------- #
# wrapper
# --------------------------------------------------------------------------- #
def basic_block_forward(x_nchw, params, stride):
    """Fused BasicBlock forward; input/output are NCHW float32."""
    N, Cin, H, W = x_nchw.shape
    Cout = params["w1"].shape[0]          # torch conv weight: (Cout, Cin, 3, 3)
    has_proj = (stride != 1) or (Cin != Cout)

    Ho = (H - 1) // stride + 1
    Wo = (W - 1) // stride + 1
    M = N * Ho * Wo
    Cp = _round_up(Cout, LANES)
    vmem_limit = _vmem_limit_bytes()

    x = jnp.transpose(x_nchw, (0, 2, 3, 1)).astype(jnp.float32)       # NHWC

    def bn_vec(name):
        return _pad_last(params[name].astype(jnp.float32), Cp)        # (Cp,)

    # ---------------- pass A: conv1 (+ projection shortcut) ----------------
    # TODO(synk): for large feature maps build the conv1 im2col in-kernel from
    # a halo-padded x tile (like conv2) to avoid the 9x HBM patch duplication.
    p1 = _im2col_3x3(x, stride, Ho, Wo)                               # (M, 9*Cin)
    K1p = _round_up(9 * Cin, LANES)
    TM = 512 if M >= 512 else _round_up(M, 16)     # bf16 sublane-friendly rows
    Mp = _round_up(M, TM)                          # zero rows -> 0 in BN sums
    n_mt = Mp // TM
    p1 = _pad_rows(_pad_last(p1, K1p), Mp).astype(jnp.bfloat16)
    w1 = jnp.transpose(params["w1"], (2, 3, 1, 0)).reshape(9 * Cin, Cout)
    w1 = _pad_2d(w1, K1p, Cp).astype(jnp.bfloat16)

    a_in = [p1, w1]
    a_in_specs = [pl.BlockSpec((TM, K1p), lambda i: (i, 0)),
                  pl.BlockSpec((K1p, Cp), lambda i: (0, 0))]
    a_out_shape = [jax.ShapeDtypeStruct((Mp, Cp), jnp.float32)]       # acc1
    a_out_specs = [pl.BlockSpec((TM, Cp), lambda i: (i, 0))]
    if has_proj:
        xs = x[:, ::stride, ::stride, :].reshape(M, Cin)
        Kscp = _round_up(Cin, LANES)
        xs = _pad_rows(_pad_last(xs, Kscp), Mp).astype(jnp.bfloat16)
        wsc = jnp.transpose(params["wsc"].reshape(Cout, Cin), (1, 0))
        wsc = _pad_2d(wsc, Kscp, Cp).astype(jnp.bfloat16)
        a_in += [xs, wsc]
        a_in_specs += [pl.BlockSpec((TM, Kscp), lambda i: (i, 0)),
                       pl.BlockSpec((Kscp, Cp), lambda i: (0, 0))]
        a_out_shape.append(jax.ShapeDtypeStruct((Mp, Cp), jnp.float32))   # accs
        a_out_specs.append(pl.BlockSpec((TM, Cp), lambda i: (i, 0)))
    a_out_shape.append(jax.ShapeDtypeStruct((n_mt, STAT_ROWS, Cp), jnp.float32))
    a_out_specs.append(pl.BlockSpec((1, STAT_ROWS, Cp), lambda i: (i, 0, 0)))

    a_outs = pl.pallas_call(
        _make_pass_a_kernel(has_proj),
        out_shape=tuple(a_out_shape),
        grid=(n_mt,),
        in_specs=a_in_specs,
        out_specs=tuple(a_out_specs),
        compiler_params=pltpu.CompilerParams(
            dimension_semantics=("parallel",),
            vmem_limit_bytes=vmem_limit),
    )(*a_in)

    if has_proj:
        acc1, accs, stats_a = a_outs
    else:
        acc1, stats_a = a_outs
        accs = None
    stats_a = jnp.sum(stats_a, axis=0)            # tiny cross-tile reduction
    scale1, shift1 = _fold_bn(stats_a[0], stats_a[1],
                              bn_vec("bn1_gamma"), bn_vec("bn1_beta"), M)

    # ---------------- pass B: bn1+relu -> conv2 (9 accumulated dots) ----------------
    a1v = acc1[:M].reshape(N, Ho, Wo, Cp)
    w2 = jnp.transpose(params["w2"], (2, 3, 1, 0))                    # (3,3,Ci,Co)
    w2 = jnp.pad(w2, ((0, 0), (0, 0), (0, Cp - Cout), (0, Cp - Cout)))
    w2 = w2.reshape(9, Cp, Cp).astype(jnp.bfloat16)

    Wp = _round_up(Wo + 2, 8)                     # tile-friendly scratch width
    per_img = (Ho * Wo * Cp * 4) * 4 + (Ho + 2) * Wp * Cp * 2
    TB = _pick_tile(N, max(1, (8 * 1024 * 1024) // max(per_img, 1)))
    n_bt = N // TB

    acc2, stats_b = pl.pallas_call(
        _make_pass_b_kernel(TB, Ho, Wo, Wp, Cp),
        out_shape=(jax.ShapeDtypeStruct((N, Ho * Wo, Cp), jnp.float32),
                   jax.ShapeDtypeStruct((n_bt, STAT_ROWS, Cp), jnp.float32)),
        grid=(n_bt,),
        in_specs=[pl.BlockSpec((TB, Ho, Wo, Cp), lambda b: (b, 0, 0, 0)),
                  pl.BlockSpec((1, Cp), lambda b: (0, 0)),
                  pl.BlockSpec((1, Cp), lambda b: (0, 0)),
                  pl.BlockSpec((9, Cp, Cp), lambda b: (0, 0, 0))],
        out_specs=(pl.BlockSpec((TB, Ho * Wo, Cp), lambda b: (b, 0, 0)),
                   pl.BlockSpec((1, STAT_ROWS, Cp), lambda b: (b, 0, 0))),
        scratch_shapes=[pltpu.VMEM((TB, Ho + 2, Wp, Cp), jnp.bfloat16)],
        compiler_params=pltpu.CompilerParams(
            dimension_semantics=("parallel",),
            vmem_limit_bytes=vmem_limit),
    )(a1v, scale1, shift1, w2)

    stats_b = jnp.sum(stats_b, axis=0)
    scale2, shift2 = _fold_bn(stats_b[0], stats_b[1],
                              bn_vec("bn2_gamma"), bn_vec("bn2_beta"), M)

    # ---------------- pass C: bn2 + shortcut + relu ----------------
    c_in = [acc2]
    c_specs = [pl.BlockSpec((TB, Ho * Wo, Cp), lambda b: (b, 0, 0))]
    if has_proj:
        scale_s, shift_s = _fold_bn(stats_a[2], stats_a[3],
                                    bn_vec("bnsc_gamma"), bn_vec("bnsc_beta"), M)
        accs_v = accs[:M].reshape(N, Ho * Wo, Cp)
        c_in += [accs_v, scale2, shift2, scale_s, shift_s]
        c_specs += [pl.BlockSpec((TB, Ho * Wo, Cp), lambda b: (b, 0, 0)),
                    pl.BlockSpec((1, Cp), lambda b: (0, 0)),
                    pl.BlockSpec((1, Cp), lambda b: (0, 0)),
                    pl.BlockSpec((1, Cp), lambda b: (0, 0)),
                    pl.BlockSpec((1, Cp), lambda b: (0, 0))]
    else:
        xs_id = _pad_last(x.reshape(N, Ho * Wo, Cin), Cp).astype(jnp.bfloat16)
        c_in += [xs_id, scale2, shift2]
        c_specs += [pl.BlockSpec((TB, Ho * Wo, Cp), lambda b: (b, 0, 0)),
                    pl.BlockSpec((1, Cp), lambda b: (0, 0)),
                    pl.BlockSpec((1, Cp), lambda b: (0, 0))]

    out = pl.pallas_call(
        _make_pass_c_kernel(has_proj),
        out_shape=jax.ShapeDtypeStruct((N, Ho * Wo, Cp), jnp.float32),
        grid=(n_bt,),
        in_specs=c_specs,
        out_specs=pl.BlockSpec((TB, Ho * Wo, Cp), lambda b: (b, 0, 0)),
        compiler_params=pltpu.CompilerParams(
            dimension_semantics=("parallel",),
            vmem_limit_bytes=vmem_limit),
    )(*c_in)

    out = out.reshape(N, Ho, Wo, Cp)[..., :Cout]
    return jnp.transpose(out, (0, 3, 1, 2))                          # NCHW


# ------------------------- pure-JAX reference (for checking) -------------------------
def reference_forward(x, params, stride):
    def conv(x, w, s, pad):
        return jax.lax.conv_general_dilated(
            x, w, (s, s), ((pad, pad), (pad, pad)),
            dimension_numbers=("NCHW", "OIHW", "NCHW"))

    def bn(x, gamma, beta):
        mean = jnp.mean(x, axis=(0, 2, 3), keepdims=True)
        var = jnp.mean(jnp.square(x - mean), axis=(0, 2, 3), keepdims=True)
        return ((x - mean) / jnp.sqrt(var + EPS)) * gamma.reshape(1, -1, 1, 1) \
            + beta.reshape(1, -1, 1, 1)

    out = jax.nn.relu(bn(conv(x, params["w1"], stride, 1),
                         params["bn1_gamma"], params["bn1_beta"]))
    out = bn(conv(out, params["w2"], 1, 1), params["bn2_gamma"], params["bn2_beta"])
    if stride != 1 or x.shape[1] != params["w1"].shape[0]:
        sc = bn(conv(x, params["wsc"], stride, 0),
                params["bnsc_gamma"], params["bnsc_beta"])
    else:
        sc = x
    return jax.nn.relu(out + sc)


def make_params(key, in_planes, planes, stride):
    ks = jax.random.split(key, 9)
    p = {
        "w1": 0.2 * jax.random.normal(ks[0], (planes, in_planes, 3, 3), jnp.float32),
        "bn1_gamma": 1.0 + 0.1 * jax.random.normal(ks[1], (planes,), jnp.float32),
        "bn1_beta": 0.1 * jax.random.normal(ks[2], (planes,), jnp.float32),
        "w2": 0.2 * jax.random.normal(ks[3], (planes, planes, 3, 3), jnp.float32),
        "bn2_gamma": 1.0 + 0.1 * jax.random.normal(ks[4], (planes,), jnp.float32),
        "bn2_beta": 0.1 * jax.random.normal(ks[5], (planes,), jnp.float32),
    }
    if stride != 1 or in_planes != planes:
        p["wsc"] = 0.2 * jax.random.normal(ks[6], (planes, in_planes, 1, 1), jnp.float32)
        p["bnsc_gamma"] = 1.0 + 0.1 * jax.random.normal(ks[7], (planes,), jnp.float32)
        p["bnsc_beta"] = 0.1 * jax.random.normal(ks[8], (planes,), jnp.float32)
    return p


if __name__ == "__main__":
    configs = [
        # (N, in_planes, planes, H, W, stride)
        (2, 4, 8, 16, 16, 1),     # projection shortcut (channel change)
        (2, 8, 8, 16, 16, 1),     # identity shortcut
        (2, 8, 16, 16, 16, 2),    # strided + projection shortcut
    ]
    key = jax.random.PRNGKey(0)
    for (N, cin, cout, H, W, stride) in configs:
        key, pk, xk = jax.random.split(key, 3)
        params = make_params(pk, cin, cout, stride)
        x = jax.random.normal(xk, (N, cin, H, W), jnp.float32)

        out = jax.block_until_ready(basic_block_forward(x, params, stride))
        ref = jax.block_until_ready(reference_forward(x, params, stride))
        np.testing.assert_allclose(np.asarray(out), np.asarray(ref),
                                   rtol=5e-2, atol=5e-2)

    print("KERNEL_OK")
</pallas_src>

<mosaic_0001>
module attributes {stable_mosaic.version = 11 : i64} {
  func.func @kernel(%arg0: i32, %arg1: memref<512x128xbf16, #tpu.memory_space<vmem>>, %arg2: memref<128x128xbf16, #tpu.memory_space<vmem>>, %arg3: memref<512x128xbf16, #tpu.memory_space<vmem>>, %arg4: memref<128x128xbf16, #tpu.memory_space<vmem>>, %arg5: memref<512x128xf32, #tpu.memory_space<vmem>>, %arg6: memref<512x128xf32, #tpu.memory_space<vmem>>, %arg7: memref<1x8x128xf32, #tpu.memory_space<vmem>>) attributes {dimension_semantics = [#tpu.dimension_semantics<parallel>], iteration_bounds = array<i64: 1>, scalar_prefetch = 0 : i64, scratch_operands = 0 : i64, tpu.core_type = #tpu.core_type<tc>, window_params = [{transform_indices = @transform_0, window_bounds = array<i64: 512, 128>}, {pipeline_mode = #tpu.pipeline_mode<synchronous>, transform_indices = @transform_1, window_bounds = array<i64: 128, 128>}, {transform_indices = @transform_2, window_bounds = array<i64: 512, 128>}, {pipeline_mode = #tpu.pipeline_mode<synchronous>, transform_indices = @transform_3, window_bounds = array<i64: 128, 128>}, {transform_indices = @transform_4, window_bounds = array<i64: 512, 128>}, {transform_indices = @transform_5, window_bounds = array<i64: 512, 128>}, {transform_indices = @transform_6, window_bounds = array<i64: 1, 8, 128>}]} {
    %c0 = arith.constant 0 : index
    %c0_0 = arith.constant 0 : index
    %0 = vector.load %arg1[%c0, %c0_0] : memref<512x128xbf16, #tpu.memory_space<vmem>>, vector<512x128xbf16>
    %c0_1 = arith.constant 0 : index
    %c0_2 = arith.constant 0 : index
    %1 = vector.load %arg2[%c0_1, %c0_2] : memref<128x128xbf16, #tpu.memory_space<vmem>>, vector<128x128xbf16>
    %cst = arith.constant dense<0.000000e+00> : vector<512x128xf32>
    %2 = tpu.matmul %0, %1, %cst {dimension_numbers = #tpu.dot_dimension_numbers<[1], [0], [0], [1], [0, 0, 1, 1], [], []>} : vector<512x128xbf16>, vector<128x128xbf16>, vector<512x128xf32> -> vector<512x128xf32>
    %c0_3 = arith.constant 0 : index
    %c0_4 = arith.constant 0 : index
    %3 = vector.load %arg5[%c0_3, %c0_4] : memref<512x128xf32, #tpu.memory_space<vmem>>, vector<512x128xf32>
    tpu.vector_store %arg5[%c0_3, %c0_4], %2 {strides = array<i32>} : memref<512x128xf32, #tpu.memory_space<vmem>>, vector<512x128xf32>,
    %cst_5 = arith.constant dense<0.000000e+00> : vector<128xf32>
    %4 = vector.multi_reduction <add>, %2, %cst_5 [0] : vector<512x128xf32> to vector<128xf32>
    %5 = vector.shape_cast %4 : vector<128xf32> to vector<1x128xf32>
    %6 = arith.mulf %2, %2 : vector<512x128xf32>
    %cst_6 = arith.constant dense<0.000000e+00> : vector<128xf32>
    %7 = vector.multi_reduction <add>, %6, %cst_6 [0] : vector<512x128xf32> to vector<128xf32>
    %8 = vector.shape_cast %7 : vector<128xf32> to vector<1x128xf32>
    %cst_7 = arith.constant 0.000000e+00 : f32
    %9 = vector.broadcast %cst_7 : f32 to vector<1x128xf32>
    %c0_8 = arith.constant 0 : index
    %c0_9 = arith.constant 0 : index
    %10 = vector.load %arg3[%c0_8, %c0_9] : memref<512x128xbf16, #tpu.memory_space<vmem>>, vector<512x128xbf16>
    %c0_10 = arith.constant 0 : index
    %c0_11 = arith.constant 0 : index
    %11 = vector.load %arg4[%c0_10, %c0_11] : memref<128x128xbf16, #tpu.memory_space<vmem>>, vector<128x128xbf16>
    %cst_12 = arith.constant dense<0.000000e+00> : vector<512x128xf32>
    %12 = tpu.matmul %10, %11, %cst_12 {dimension_numbers = #tpu.dot_dimension_numbers<[1], [0], [0], [1], [0, 0, 1, 1], [], []>} : vector<512x128xbf16>, vector<128x128xbf16>, vector<512x128xf32> -> vector<512x128xf32>
    %c0_13 = arith.constant 0 : index
    %c0_14 = arith.constant 0 : index
    %13 = vector.load %arg6[%c0_13, %c0_14] : memref<512x128xf32, #tpu.memory_space<vmem>>, vector<512x128xf32>
    tpu.vector_store %arg6[%c0_13, %c0_14], %12 {strides = array<i32>} : memref<512x128xf32, #tpu.memory_space<vmem>>, vector<512x128xf32>,
    %cst_15 = arith.constant dense<0.000000e+00> : vector<128xf32>
    %14 = vector.multi_reduction <add>, %12, %cst_15 [0] : vector<512x128xf32> to vector<128xf32>
    %15 = vector.shape_cast %14 : vector<128xf32> to vector<1x128xf32>
    %16 = arith.mulf %12, %12 : vector<512x128xf32>
    %cst_16 = arith.constant dense<0.000000e+00> : vector<128xf32>
    %17 = vector.multi_reduction <add>, %16, %cst_16 [0] : vector<512x128xf32> to vector<128xf32>
    %18 = vector.shape_cast %17 : vector<128xf32> to vector<1x128xf32>
    %19 = tpu.concatenate %5, %8, %15, %18, %9, %9, %9, %9 in 0 : vector<1x128xf32>, vector<1x128xf32>, vector<1x128xf32>, vector<1x128xf32>, vector<1x128xf32>, vector<1x128xf32>, vector<1x128xf32>, vector<1x128xf32> -> vector<8x128xf32>
    %20 = vector.shape_cast %19 : vector<8x128xf32> to vector<1x8x128xf32>
    %c0_17 = arith.constant 0 : index
    %c0_18 = arith.constant 0 : index
    %c0_19 = arith.constant 0 : index
    %21 = vector.load %arg7[%c0_17, %c0_18, %c0_19] : memref<1x8x128xf32, #tpu.memory_space<vmem>>, vector<1x8x128xf32>
    tpu.vector_store %arg7[%c0_17, %c0_18, %c0_19], %20 {strides = array<i32>} : memref<1x8x128xf32, #tpu.memory_space<vmem>>, vector<1x8x128xf32>,
    return
  }
  func.func @transform_0(%arg0: i32) -> (i32, i32) {
    %c0_i32 = arith.constant 0 : i32
    %c0_i32_0 = arith.constant 0 : i32
    return %arg0, %c0_i32 : i32, i32
  }
  func.func @transform_1(%arg0: i32) -> (i32, i32) {
    %c0_i32 = arith.constant 0 : i32
    %c0_i32_0 = arith.constant 0 : i32
    %c0_i32_1 = arith.constant 0 : i32
    return %c0_i32, %c0_i32_0 : i32, i32
  }
  func.func @transform_2(%arg0: i32) -> (i32, i32) {
    %c0_i32 = arith.constant 0 : i32
    %c0_i32_0 = arith.constant 0 : i32
    return %arg0, %c0_i32 : i32, i32
  }
  func.func @transform_3(%arg0: i32) -> (i32, i32) {
    %c0_i32 = arith.constant 0 : i32
    %c0_i32_0 = arith.constant 0 : i32
    %c0_i32_1 = arith.constant 0 : i32
    return %c0_i32, %c0_i32_0 : i32, i32
  }
  func.func @transform_4(%arg0: i32) -> (i32, i32) {
    %c0_i32 = arith.constant 0 : i32
    %c0_i32_0 = arith.constant 0 : i32
    return %arg0, %c0_i32 : i32, i32
  }
  func.func @transform_5(%arg0: i32) -> (i32, i32) {
    %c0_i32 = arith.constant 0 : i32
    %c0_i32_0 = arith.constant 0 : i32
    return %arg0, %c0_i32 : i32, i32
  }
  func.func @transform_6(%arg0: i32) -> (i32, i32, i32) {
    %c0_i32 = arith.constant 0 : i32
    %c0_i32_0 = arith.constant 0 : i32
    %c0_i32_1 = arith.constant 0 : i32
    return %arg0, %c0_i32, %c0_i32_0 : i32, i32, i32
  }
}

</mosaic_0001>

<llo_original>
// kernel: tpu_custom_call.1
$region0: #{tpu_custom_call.1}
  #allocation0 [shape = 'u32[]', space=smem, size = 0x4, offset = 0x4, fixed_abs, tag = 'smem constant byte address 0x4 - core index']
  #allocation1 [shape = 'u32[144,128]{1,0:T(1,128)}', space=vmem, size = 0x12000, scoped, tag = 'internal scratch']
  %s0 = inlined_call_operand.hbm [shape: bf16[512,128], index: 0, kind: input, shape index: {}]
  %s1 = inlined_call_operand.hbm [shape: bf16[128,128], index: 1, kind: input, shape index: {}]
  %s2 = inlined_call_operand.hbm [shape: bf16[512,128], index: 2, kind: input, shape index: {}]
  %s3 = inlined_call_operand.hbm [shape: bf16[128,128], index: 3, kind: input, shape index: {}]
  %s4 = inlined_call_operand.hbm [shape: f32[512,128], index: 4, kind: output, shape index: {0}]
  %s5 = inlined_call_operand.hbm [shape: f32[512,128], index: 5, kind: output, shape index: {1}]
  %s6 = inlined_call_operand.hbm [shape: f32[1,8,128], index: 6, kind: output, shape index: {2}]
  %7 = xla_tuple %s4, %s5, %s6
  %s8 = sld [smem:[#allocation0]]
  $region58: #{tpu_custom_call.1} parent=0
    _
  %s10 = ssub.s32 1, %s8
  %s11 = scalar_select 0, %s10, %s8
  $region1: #{tpu_custom_call.1} parent=0
    #allocation2 [shape = 'u8[131072]{0}', space=vmem, size = 0x20000, scoped, tag = 'input window, operand 0, single buffered']
    #allocation3 [shape = 's32[1]{0}', space=sflag, size = 0x4, scoped, tag = 'scoped memory for tpu_custom_call.1']
    #allocation4 [shape = 's32[1]{0}', space=sflag, size = 0x4, scoped, tag = 'scoped memory for tpu_custom_call.1']
    #allocation5 [shape = 'u8[32768]{0}', space=vmem, size = 0x8000, scoped, tag = 'input window, operand 1, single buffered']
    #allocation6 [shape = 's32[1]{0}', space=sflag, size = 0x4, scoped, tag = 'scoped memory for tpu_custom_call.1']
    #allocation7 [shape = 'u8[131072]{0}', space=vmem, size = 0x20000, scoped, tag = 'input window, operand 2, single buffered']
    #allocation8 [shape = 'u8[32768]{0}', space=vmem, size = 0x8000, scoped, tag = 'input window, operand 3, single buffered']
    #allocation9 [shape = 's32[1]{0}', space=sflag, size = 0x4, scoped, tag = 'scoped memory for tpu_custom_call.1']
    #allocation10 [shape = 'u8[262144]{0}', space=vmem, size = 0x40000, scoped, tag = 'output window, operand 0, single buffered']
    #allocation11 [shape = 'u8[262144]{0}', space=vmem, size = 0x40000, scoped, tag = 'output window, operand 1, single buffered']
    #allocation12 [shape = 's32[1]{0}', space=sflag, size = 0x4, scoped, tag = 'scoped memory for tpu_custom_call.1']
    #allocation13 [shape = 'u8[4096]{0}', space=vmem, size = 0x1000, scoped, tag = 'output window, operand 2, single buffered']
    %12 = vsyncpa [#allocation3], 0
    %13 = vsyncpa [#allocation6], 0
    %14 = vsyncpa [#allocation9], 0
    %15 = vsyncpa [#allocation4], 0
    %16 = vsyncpa [#allocation12], 0
    // Predicated region
    $region2: #{tpu_custom_call.1} parent=1 // pred_check
      _
    $region3: #{tpu_custom_call.1} parent=1 // pred_check_branch
      %18 = sbr.rel (0) target = $region5
    $region4: #{tpu_custom_call.1} parent=1 // pred_region
      %s20 = ssub.s32 4096, 4096
      %21 = vsyncadd [#allocation3], %s20
      %s22 = sshll.u32 [#allocation2], 4
      %s23 = int_to_ptr.vmem [resolvable:$true] %s22
      %28 = dma.hbm_to_vmem [thread:$0]  %s0, 4096, %s23, [#allocation3], 64, 64, 4
    $region5: #{tpu_custom_call.1} parent=1 // pred_fallthru
      _
    // Predicated region
    $region6: #{tpu_custom_call.1} parent=1 // pred_check
      _
    $region7: #{tpu_custom_call.1} parent=1 // pred_check_branch
      %30 = sbr.rel (0) target = $region9
    $region8: #{tpu_custom_call.1} parent=1 // pred_region
      %s32 = ssub.s32 1024, 1024
      %33 = vsyncadd [#allocation6], %s32
      %s34 = sshll.u32 [#allocation5], 4
      %s35 = int_to_ptr.vmem [resolvable:$true] %s34
      %40 = dma.hbm_to_vmem [thread:$0]  %s1, 1024, %s35, [#allocation6], 64, 64, 4
    $region9: #{tpu_custom_call.1} parent=1 // pred_fallthru
      _
    // Predicated region
    $region10: #{tpu_custom_call.1} parent=1 // pred_check
      _
    $region11: #{tpu_custom_call.1} parent=1 // pred_check_branch
      %42 = sbr.rel (0) target = $region13
    $region12: #{tpu_custom_call.1} parent=1 // pred_region
      %s44 = ssub.s32 4096, 4096
      %45 = vsyncadd [#allocation6], %s44
      %s46 = sshll.u32 [#allocation7], 4
      %s47 = int_to_ptr.vmem [resolvable:$true] %s46
      %52 = dma.hbm_to_vmem [thread:$0]  %s2, 4096, %s47, [#allocation6], 64, 64, 4
    $region13: #{tpu_custom_call.1} parent=1 // pred_fallthru
      _
    // Predicated region
    $region14: #{tpu_custom_call.1} parent=1 // pred_check
      _
    $region15: #{tpu_custom_call.1} parent=1 // pred_check_branch
      %54 = sbr.rel (0) target = $region17
    $region16: #{tpu_custom_call.1} parent=1 // pred_region
      %s56 = ssub.s32 1024, 1024
      %57 = vsyncadd [#allocation9], %s56
      %s58 = sshll.u32 [#allocation8], 4
      %s59 = int_to_ptr.vmem [resolvable:$true] %s58
      %64 = dma.hbm_to_vmem [thread:$0]  %s3, 1024, %s59, [#allocation9], 64, 64, 4
    $region17: #{tpu_custom_call.1} parent=1 // pred_fallthru
      _
    // Predicated region
    $region18: #{tpu_custom_call.1} parent=1 // pred_check
      _
    $region19: #{tpu_custom_call.1} parent=1 // pred_check_branch
      %66 = sbr.rel (0) target = $region21
    $region20: #{tpu_custom_call.1} parent=1 // pred_region
      %67 = dma.done [#allocation3], 4096
    $region21: #{tpu_custom_call.1} parent=1 // pred_fallthru
      _
    // Predicated region
    $region22: #{tpu_custom_call.1} parent=1 // pred_check
      _
    $region23: #{tpu_custom_call.1} parent=1 // pred_check_branch
      %69 = sbr.rel (0) target = $region25
    $region24: #{tpu_custom_call.1} parent=1 // pred_region
      %70 = dma.done [#allocation6], 1024
    $region25: #{tpu_custom_call.1} parent=1 // pred_fallthru
      _
    // Predicated region
    $region26: #{tpu_custom_call.1} parent=1 // pred_check
      _
    $region27: #{tpu_custom_call.1} parent=1 // pred_check_branch
      %72 = sbr.rel (0) target = $region29
    $region28: #{tpu_custom_call.1} parent=1 // pred_region
      %73 = dma.done [#allocation6], 4096
    $region29: #{tpu_custom_call.1} parent=1 // pred_fallthru
      _
    // Predicated region
    $region30: #{tpu_custom_call.1} parent=1 // pred_check
      _
    $region31: #{tpu_custom_call.1} parent=1 // pred_check_branch
      %75 = sbr.rel (0) target = $region33
    $region32: #{tpu_custom_call.1} parent=1 // pred_region
      %76 = dma.done [#allocation9], 1024
    $region33: #{tpu_custom_call.1} parent=1 // pred_fallthru
      _
    %v78 = vld [vmem:[#allocation2] sm:$0xf]
    %v79 = vld [vmem:[#allocation2 + $0x4] sm:$0xf]
    %v80 = vld [vmem:[#allocation2 + $0x8] sm:$0xf]
    %v81 = vld [vmem:[#allocation2 + $0xc] sm:$0xf]
    %v82 = vld [vmem:[#allocation2 + $0x10] sm:$0xf]
    %v83 = vld [vmem:[#allocation2 + $0x14] sm:$0xf]
    %v84 = vld [vmem:[#allocation2 + $0x18] sm:$0xf]
    %v85 = vld [vmem:[#allocation2 + $0x1c] sm:$0xf]
    %v86 = vld [vmem:[#allocation2 + $0x20] sm:$0xf]
    %v87 = vld [vmem:[#allocation2 + $0x24] sm:$0xf]
    %v88 = vld [vmem:[#allocation2 + $0x28] sm:$0xf]
    %v89 = vld [vmem:[#allocation2 + $0x2c] sm:$0xf]
    %v90 = vld [vmem:[#allocation2 + $0x30] sm:$0xf]
    %v91 = vld [vmem:[#allocation2 + $0x34] sm:$0xf]
    %v92 = vld [vmem:[#allocation2 + $0x38] sm:$0xf]
    %v93 = vld [vmem:[#allocation2 + $0x3c] sm:$0xf]
    %v94 = vld [vmem:[#allocation2 + $0x40] sm:$0xf]
    %v95 = vld [vmem:[#allocation2 + $0x44] sm:$0xf]
    %v96 = vld [vmem:[#allocation2 + $0x48] sm:$0xf]
    %v97 = vld [vmem:[#allocation2 + $0x4c] sm:$0xf]
    %v98 = vld [vmem:[#allocation2 + $0x50] sm:$0xf]
    %v99 = vld [vmem:[#allocation2 + $0x54] sm:$0xf]
    %v100 = vld [vmem:[#allocation2 + $0x58] sm:$0xf]
    %v101 = vld [vmem:[#allocation2 + $0x5c] sm:$0xf]
    %v102 = vld [vmem:[#allocation2 + $0x60] sm:$0xf]
    %v103 = vld [vmem:[#allocation2 + $0x64] sm:$0xf]
    %v104 = vld [vmem:[#allocation2 + $0x68] sm:$0xf]
    %v105 = vld [vmem:[#allocation2 + $0x6c] sm:$0xf]
    %v106 = vld [vmem:[#allocation2 + $0x70] sm:$0xf]
    %v107 = vld [vmem:[#allocation2 + $0x74] sm:$0xf]
    %v108 = vld [vmem:[#allocation2 + $0x78] sm:$0xf]
    %v109 = vld [vmem:[#allocation2 + $0x7c] sm:$0xf]
    %v110 = vld [vmem:[#allocation2 + $0x80] sm:$0xf]
    %v111 = vld [vmem:[#allocation2 + $0x84] sm:$0xf]
    %v112 = vld [vmem:[#allocation2 + $0x88] sm:$0xf]
    %v113 = vld [vmem:[#allocation2 + $0x8c] sm:$0xf]
    %v114 = vld [vmem:[#allocation2 + $0x90] sm:$0xf]
    %v115 = vld [vmem:[#allocation2 + $0x94] sm:$0xf]
    %v116 = vld [vmem:[#allocation2 + $0x98] sm:$0xf]
    %v117 = vld [vmem:[#allocation2 + $0x9c] sm:$0xf]
    %v118 = vld [vmem:[#allocation2 + $0xa0] sm:$0xf]
    %v119 = vld [vmem:[#allocation2 + $0xa4] sm:$0xf]
    %v120 = vld [vmem:[#allocation2 + $0xa8] sm:$0xf]
    %v121 = vld [vmem:[#allocation2 + $0xac] sm:$0xf]
    %v122 = vld [vmem:[#allocation2 + $0xb0] sm:$0xf]
    %v123 = vld [vmem:[#allocation2 + $0xb4] sm:$0xf]
    %v124 = vld [vmem:[#allocation2 + $0xb8] sm:$0xf]
    %v125 = vld [vmem:[#allocation2 + $0xbc] sm:$0xf]
    %v126 = vld [vmem:[#allocation2 + $0xc0] sm:$0xf]
    %v127 = vld [vmem:[#allocation2 + $0xc4] sm:$0xf]
    %v128 = vld [vmem:[#allocation2 + $0xc8] sm:$0xf]
    %v129 = vld [vmem:[#allocation2 + $0xcc] sm:$0xf]
    %v130 = vld [vmem:[#allocation2 + $0xd0] sm:$0xf]
    %v131 = vld [vmem:[#allocation2 + $0xd4] sm:$0xf]
    %v132 = vld [vmem:[#allocation2 + $0xd8] sm:$0xf]
    %v133 = vld [vmem:[#allocation2 + $0xdc] sm:$0xf]
    %v134 = vld [vmem:[#allocation2 + $0xe0] sm:$0xf]
    %v135 = vld [vmem:[#allocation2 + $0xe4] sm:$0xf]
    %v136 = vld [vmem:[#allocation2 + $0xe8] sm:$0xf]
    %v137 = vld [vmem:[#allocation2 + $0xec] sm:$0xf]
    %v138 = vld [vmem:[#allocation2 + $0xf0] sm:$0xf]
    %v139 = vld [vmem:[#allocation2 + $0xf4] sm:$0xf]
    %v140 = vld [vmem:[#allocation2 + $0xf8] sm:$0xf]
    %v141 = vld [vmem:[#allocation2 + $0xfc] sm:$0xf]
    %v142 = vld [vmem:[#allocation5] sm:$0xf]
    %v143 = vld [vmem:[#allocation5 + $0x4] sm:$0xf]
    %v144 = vld [vmem:[#allocation5 + $0x8] sm:$0xf]
    %v145 = vld [vmem:[#allocation5 + $0xc] sm:$0xf]
    %v146 = vld [vmem:[#allocation5 + $0x10] sm:$0xf]
    %v147 = vld [vmem:[#allocation5 + $0x14] sm:$0xf]
    %v148 = vld [vmem:[#allocation5 + $0x18] sm:$0xf]
    %v149 = vld [vmem:[#allocation5 + $0x1c] sm:$0xf]
    %v150 = vld [vmem:[#allocation5 + $0x20] sm:$0xf]
    %v151 = vld [vmem:[#allocation5 + $0x24] sm:$0xf]
    %v152 = vld [vmem:[#allocation5 + $0x28] sm:$0xf]
    %v153 = vld [vmem:[#allocation5 + $0x2c] sm:$0xf]
    %v154 = vld [vmem:[#allocation5 + $0x30] sm:$0xf]
    %v155 = vld [vmem:[#allocation5 + $0x34] sm:$0xf]
    %v156 = vld [vmem:[#allocation5 + $0x38] sm:$0xf]
    %v157 = vld [vmem:[#allocation5 + $0x3c] sm:$0xf]
    %v222 = vunpack.c.l.b16 %v78
    %v223 = vunpack.c.l.b16 %v79
    %v224 = vunpack.c.l.b16 %v80
    %v225 = vunpack.c.l.b16 %v81
    %v226 = vunpack.c.l.b16 %v82
    %v227 = vunpack.c.l.b16 %v83
    %v228 = vunpack.c.l.b16 %v84
    %v229 = vunpack.c.l.b16 %v85
    %v230 = vunpack.c.l.b16 %v86
    %v231 = vunpack.c.l.b16 %v87
    %v232 = vunpack.c.l.b16 %v88
    %v233 = vunpack.c.l.b16 %v89
    %v234 = vunpack.c.l.b16 %v90
    %v235 = vunpack.c.l.b16 %v91
    %v236 = vunpack.c.l.b16 %v92
    %v237 = vunpack.c.l.b16 %v93
    %v238 = vunpack.c.l.b16 %v94
    %v239 = vunpack.c.l.b16 %v95
    %v240 = vunpack.c.l.b16 %v96
    %v241 = vunpack.c.l.b16 %v97
    %v242 = vunpack.c.l.b16 %v98
    %v243 = vunpack.c.l.b16 %v99
    %v244 = vunpack.c.l.b16 %v100
    %v245 = vunpack.c.l.b16 %v101
    %v246 = vunpack.c.l.b16 %v102
    %v247 = vunpack.c.l.b16 %v103
    %v248 = vunpack.c.l.b16 %v104
    %v249 = vunpack.c.l.b16 %v105
    %v250 = vunpack.c.l.b16 %v106
    %v251 = vunpack.c.l.b16 %v107
    %v252 = vunpack.c.l.b16 %v108
    %v253 = vunpack.c.l.b16 %v109
    %v254 = vunpack.c.l.b16 %v110
    %v255 = vunpack.c.l.b16 %v111
    %v256 = vunpack.c.l.b16 %v112
    %v257 = vunpack.c.l.b16 %v113
    %v258 = vunpack.c.l.b16 %v114
    %v259 = vunpack.c.l.b16 %v115
    %v260 = vunpack.c.l.b16 %v116
    %v261 = vunpack.c.l.b16 %v117
    %v262 = vunpack.c.l.b16 %v118
    %v263 = vunpack.c.l.b16 %v119
    %v264 = vunpack.c.l.b16 %v120
    %v265 = vunpack.c.l.b16 %v121
    %v266 = vunpack.c.l.b16 %v122
    %v267 = vunpack.c.l.b16 %v123
    %v268 = vunpack.c.l.b16 %v124
    %v269 = vunpack.c.l.b16 %v125
    %v270 = vunpack.c.l.b16 %v126
    %v271 = vunpack.c.l.b16 %v127
    %v272 = vunpack.c.l.b16 %v128
    %v273 = vunpack.c.l.b16 %v129
    %v274 = vunpack.c.l.b16 %v130
    %v275 = vunpack.c.l.b16 %v131
    %v276 = vunpack.c.l.b16 %v132
    %v277 = vunpack.c.l.b16 %v133
    %v278 = vunpack.c.l.b16 %v134
    %v279 = vunpack.c.l.b16 %v135
    %v280 = vunpack.c.l.b16 %v136
    %v281 = vunpack.c.l.b16 %v137
    %v282 = vunpack.c.l.b16 %v138
    %v283 = vunpack.c.l.b16 %v139
    %v284 = vunpack.c.l.b16 %v140
    %v285 = vunpack.c.l.b16 %v141
    %v286 = vpack.c.b16 %v223, %v222
    %v287 = vpack.c.b16 %v225, %v224
    %v288 = vpack.c.b16 %v227, %v226
    %v289 = vpack.c.b16 %v229, %v228
    %v290 = vpack.c.b16 %v231, %v230
    %v291 = vpack.c.b16 %v233, %v232
    %v292 = vpack.c.b16 %v235, %v234
    %v293 = vpack.c.b16 %v237, %v236
    %v294 = vpack.c.b16 %v239, %v238
    %v295 = vpack.c.b16 %v241, %v240
    %v296 = vpack.c.b16 %v243, %v242
    %v297 = vpack.c.b16 %v245, %v244
    %v298 = vpack.c.b16 %v247, %v246
    %v299 = vpack.c.b16 %v249, %v248
    %v300 = vpack.c.b16 %v251, %v250
    %v301 = vpack.c.b16 %v253, %v252
    %v302 = vpack.c.b16 %v255, %v254
    %v303 = vpack.c.b16 %v257, %v256
    %v304 = vpack.c.b16 %v259, %v258
    %v305 = vpack.c.b16 %v261, %v260
    %v306 = vpack.c.b16 %v263, %v262
    %v307 = vpack.c.b16 %v265, %v264
    %v308 = vpack.c.b16 %v267, %v266
    %v309 = vpack.c.b16 %v269, %v268
    %v310 = vpack.c.b16 %v271, %v270
    %v311 = vpack.c.b16 %v273, %v272
    %v312 = vpack.c.b16 %v275, %v274
    %v313 = vpack.c.b16 %v277, %v276
    %v314 = vpack.c.b16 %v279, %v278
    %v315 = vpack.c.b16 %v281, %v280
    %v316 = vpack.c.b16 %v283, %v282
    %v317 = vpack.c.b16 %v285, %v284
    %v366 = vunpack.c.l.b16 %v142
    %v367 = vunpack.c.l.b16 %v143
    %v368 = vunpack.c.l.b16 %v144
    %v369 = vunpack.c.l.b16 %v145
    %v370 = vunpack.c.l.b16 %v146
    %v371 = vunpack.c.l.b16 %v147
    %v372 = vunpack.c.l.b16 %v148
    %v373 = vunpack.c.l.b16 %v149
    %v374 = vunpack.c.l.b16 %v150
    %v375 = vunpack.c.l.b16 %v151
    %v376 = vunpack.c.l.b16 %v152
    %v377 = vunpack.c.l.b16 %v153
    %v378 = vunpack.c.l.b16 %v154
    %v379 = vunpack.c.l.b16 %v155
    %v380 = vunpack.c.l.b16 %v156
    %v381 = vunpack.c.l.b16 %v157
    %v382 = vpack.c.b16 %v367, %v366
    %v383 = vpack.c.b16 %v369, %v368
    %v384 = vpack.c.b16 %v371, %v370
    %v385 = vpack.c.b16 %v373, %v372
    %v386 = vpack.c.b16 %v375, %v374
    %v387 = vpack.c.b16 %v377, %v376
    %v388 = vpack.c.b16 %v379, %v378
    %v389 = vpack.c.b16 %v381, %v380
    %398 = vmatprep.subr.bf16.mxu0 0
    %399 = vmatpush1.bf16.msra.mxu0 %v382
    %400 = vmatprep.subr.bf16.mxu0 0
    %401 = vmatpush1.bf16.msra.mxu0 %v383
    %402 = vmatprep.subr.bf16.mxu0 0
    %403 = vmatpush1.bf16.msra.mxu0 %v384
    %404 = vmatprep.subr.bf16.mxu0 0
    %405 = vmatpush1.bf16.msra.mxu0 %v385
    %406 = vmatprep.subr.bf16.mxu0 0
    %407 = vmatpush1.bf16.msra.mxu0 %v386
    %408 = vmatprep.subr.bf16.mxu0 0
    %409 = vmatpush1.bf16.msra.mxu0 %v387
    %410 = vmatprep.subr.bf16.mxu0 0
    %411 = vmatpush1.bf16.msra.mxu0 %v388
    %412 = vmatprep.subr.bf16.mxu0 0
    %413 = vmatpush1.bf16.msra.mxu0 %v389
    %414 = vmatprep.subr.bf16.mxu0 0
    %415 = vmatpush1.bf16.msra.mxu0 0
    %416 = vmatprep.subr.bf16.mxu0 0
    %417 = vmatpush1.bf16.msra.mxu0 0
    %418 = vmatprep.subr.bf16.mxu0 0
    %419 = vmatpush1.bf16.msra.mxu0 0
    %420 = vmatprep.subr.bf16.mxu0 0
    %421 = vmatpush1.bf16.msra.mxu0 0
    %422 = vmatprep.subr.bf16.mxu0 0
    %423 = vmatpush1.bf16.msra.mxu0 0
    %424 = vmatprep.subr.bf16.mxu0 0
    %425 = vmatpush1.bf16.msra.mxu0 0
    %426 = vmatprep.subr.bf16.mxu0 0
    %427 = vmatpush1.bf16.msra.mxu0 0
    %428 = vmatprep.subr.bf16.mxu0 0
    %429 = vmatpush1.bf16.msra.mxu0 0
    %430 = vmatprep.mubr.bf16.mxu0 0
    %431 = vmatmul.mubr.bf16.gmra.mrb[0].mxu0 %v286
    %v432 = vpop.f32.mrb[0].mxu0
    %v433 = vadd.f32 0.0, %v432
    %v434 = vpop.f32.mrb[0].mxu0
    %v435 = vpop.f32.mrb[0].mxu0
    %v436 = vadd.f32 0.0, %v435
    %v437 = vpop.f32.mrb[0].mxu0
    %438 = vmatprep.mubr.bf16.mxu0 0
    %439 = vmatmul.mubr.bf16.gmra.mrb[0].mxu0 %v287
    %v440 = vpop.f32.mrb[0].mxu0
    %v441 = vadd.f32 0.0, %v440
    %v442 = vpop.f32.mrb[0].mxu0
    %v443 = vpop.f32.mrb[0].mxu0
    %v444 = vadd.f32 0.0, %v443
    %v445 = vpop.f32.mrb[0].mxu0
    %446 = vmatprep.mubr.bf16.mxu0 0
    %447 = vmatmul.mubr.bf16.gmra.mrb[0].mxu0 %v288
    %v448 = vpop.f32.mrb[0].mxu0
    %v449 = vadd.f32 0.0, %v448
    %v450 = vpop.f32.mrb[0].mxu0
    %v451 = vpop.f32.mrb[0].mxu0
    %v452 = vadd.f32 0.0, %v451
    %v453 = vpop.f32.mrb[0].mxu0
    %454 = vmatprep.mubr.bf16.mxu0 0
    %455 = vmatmul.mubr.bf16.gmra.mrb[0].mxu0 %v289
    %v456 = vpop.f32.mrb[0].mxu0
    %v457 = vadd.f32 0.0, %v456
    %v458 = vpop.f32.mrb[0].mxu0
    %v459 = vpop.f32.mrb[0].mxu0
    %v460 = vadd.f32 0.0, %v459
    %v461 = vpop.f32.mrb[0].mxu0
    %462 = vmatprep.mubr.bf16.mxu0 0
    %463 = vmatmul.mubr.bf16.gmra.mrb[0].mxu0 %v290
    %v464 = vpop.f32.mrb[0].mxu0
    %v465 = vadd.f32 0.0, %v464
    %v466 = vpop.f32.mrb[0].mxu0
    %v467 = vpop.f32.mrb[0].mxu0
    %v468 = vadd.f32 0.0, %v467
    %v469 = vpop.f32.mrb[0].mxu0
    %470 = vmatprep.mubr.bf16.mxu0 0
    %471 = vmatmul.mubr.bf16.gmra.mrb[0].mxu0 %v291
    %v472 = vpop.f32.mrb[0].mxu0
    %v473 = vadd.f32 0.0, %v472
    %v474 = vpop.f32.mrb[0].mxu0
    %v475 = vpop.f32.mrb[0].mxu0
    %v476 = vadd.f32 0.0, %v475
    %v477 = vpop.f32.mrb[0].mxu0
    %478 = vmatprep.mubr.bf16.mxu0 0
    %479 = vmatmul.mubr.bf16.gmra.mrb[0].mxu0 %v292
    %v480 = vpop.f32.mrb[0].mxu0
    %v481 = vadd.f32 0.0, %v480
    %v482 = vpop.f32.mrb[0].mxu0
    %v483 = vpop.f32.mrb[0].mxu0
    %v484 = vadd.f32 0.0, %v483
    %v485 = vpop.f32.mrb[0].mxu0
    %486 = vmatprep.mubr.bf16.mxu0 0
    %487 = vmatmul.mubr.bf16.gmra.mrb[0].mxu0 %v293
    %v488 = vpop.f32.mrb[0].mxu0
    %v489 = vadd.f32 0.0, %v488
    %v490 = vpop.f32.mrb[0].mxu0
    %v491 = vpop.f32.mrb[0].mxu0
    %v492 = vadd.f32 0.0, %v491
    %v493 = vpop.f32.mrb[0].mxu0
    %494 = vmatprep.mubr.bf16.mxu0 0
    %495 = vmatmul.mubr.bf16.gmra.mrb[0].mxu0 %v294
    %v496 = vpop.f32.mrb[0].mxu0
    %v497 = vadd.f32 0.0, %v496
    %v498 = vpop.f32.mrb[0].mxu0
    %v499 = vpop.f32.mrb[0].mxu0
    %v500 = vadd.f32 0.0, %v499
    %v501 = vpop.f32.mrb[0].mxu0
    %502 = vmatprep.mubr.bf16.mxu0 0
    %503 = vmatmul.mubr.bf16.gmra.mrb[0].mxu0 %v295
    %v504 = vpop.f32.mrb[0].mxu0
    %v505 = vadd.f32 0.0, %v504
    %v506 = vpop.f32.mrb[0].mxu0
    %v507 = vpop.f32.mrb[0].mxu0
    %v508 = vadd.f32 0.0, %v507
    %v509 = vpop.f32.mrb[0].mxu0
    %510 = vmatprep.mubr.bf16.mxu0 0
    %511 = vmatmul.mubr.bf16.gmra.mrb[0].mxu0 %v296
    %v512 = vpop.f32.mrb[0].mxu0
    %v513 = vadd.f32 0.0, %v512
    %v514 = vpop.f32.mrb[0].mxu0
    %v515 = vpop.f32.mrb[0].mxu0
    %v516 = vadd.f32 0.0, %v515
    %v517 = vpop.f32.mrb[0].mxu0
    %518 = vmatprep.mubr.bf16.mxu0 0
    %519 = vmatmul.mubr.bf16.gmra.mrb[0].mxu0 %v297
    %v520 = vpop.f32.mrb[0].mxu0
    %v521 = vadd.f32 0.0, %v520
    %v522 = vpop.f32.mrb[0].mxu0
    %v523 = vpop.f32.mrb[0].mxu0
    %v524 = vadd.f32 0.0, %v523
    %v525 = vpop.f32.mrb[0].mxu0
    %526 = vmatprep.mubr.bf16.mxu0 0
    %527 = vmatmul.mubr.bf16.gmra.mrb[0].mxu0 %v298
    %v528 = vpop.f32.mrb[0].mxu0
    %v529 = vadd.f32 0.0, %v528
    %v530 = vpop.f32.mrb[0].mxu0
    %v531 = vpop.f32.mrb[0].mxu0
    %v532 = vadd.f32 0.0, %v531
    %v533 = vpop.f32.mrb[0].mxu0
    %534 = vmatprep.mubr.bf16.mxu0 0
    %535 = vmatmul.mubr.bf16.gmra.mrb[0].mxu0 %v299
    %v536 = vpop.f32.mrb[0].mxu0
    %v537 = vadd.f32 0.0, %v536
    %v538 = vpop.f32.mrb[0].mxu0
    %v539 = vpop.f32.mrb[0].mxu0
    %v540 = vadd.f32 0.0, %v539
    %v541 = vpop.f32.mrb[0].mxu0
    %542 = vmatprep.mubr.bf16.mxu0 0
    %543 = vmatmul.mubr.bf16.gmra.mrb[0].mxu0 %v300
    %v544 = vpop.f32.mrb[0].mxu0
    %v545 = vadd.f32 0.0, %v544
    %v546 = vpop.f32.mrb[0].mxu0
    %v547 = vpop.f32.mrb[0].mxu0
    %v548 = vadd.f32 0.0, %v547
    %v549 = vpop.f32.mrb[0].mxu0
    %550 = vmatprep.mubr.bf16.mxu0 0
    %551 = vmatmul.mubr.bf16.gmra.mrb[0].mxu0 %v301
    %v552 = vpop.f32.mrb[0].mxu0
    %v553 = vadd.f32 0.0, %v552
    %v554 = vpop.f32.mrb[0].mxu0
    %v555 = vpop.f32.mrb[0].mxu0
    %v556 = vadd.f32 0.0, %v555
    %v557 = vpop.f32.mrb[0].mxu0
    %558 = vmatprep.mubr.bf16.mxu0 0
    %559 = vmatmul.mubr.bf16.gmra.mrb[0].mxu0 %v302
    %v560 = vpop.f32.mrb[0].mxu0
    %v561 = vadd.f32 0.0, %v560
    %v562 = vpop.f32.mrb[0].mxu0
    %v563 = vpop.f32.mrb[0].mxu0
    %v564 = vadd.f32 0.0, %v563
    %v565 = vpop.f32.mrb[0].mxu0
    %566 = vmatprep.mubr.bf16.mxu0 0
    %567 = vmatmul.mubr.bf16.gmra.mrb[0].mxu0 %v303
    %v568 = vpop.f32.mrb[0].mxu0
    %v569 = vadd.f32 0.0, %v568
    %v570 = vpop.f32.mrb[0].mxu0
    %v571 = vpop.f32.mrb[0].mxu0
    %v572 = vadd.f32 0.0, %v571
    %v573 = vpop.f32.mrb[0].mxu0
    %574 = vmatprep.mubr.bf16.mxu0 0
    %575 = vmatmul.mubr.bf16.gmra.mrb[0].mxu0 %v304
    %v576 = vpop.f32.mrb[0].mxu0
    %v577 = vadd.f32 0.0, %v576
    %v578 = vpop.f32.mrb[0].mxu0
    %v579 = vpop.f32.mrb[0].mxu0
    %v580 = vadd.f32 0.0, %v579
    %v581 = vpop.f32.mrb[0].mxu0
    %582 = vmatprep.mubr.bf16.mxu0 0
    %583 = vmatmul.mubr.bf16.gmra.mrb[0].mxu0 %v305
    %v584 = vpop.f32.mrb[0].mxu0
    %v585 = vadd.f32 0.0, %v584
    %v586 = vpop.f32.mrb[0].mxu0
    %v587 = vpop.f32.mrb[0].mxu0
    %v588 = vadd.f32 0.0, %v587
    %v589 = vpop.f32.mrb[0].mxu0
    %590 = vmatprep.mubr.bf16.mxu0 0
    %591 = vmatmul.mubr.bf16.gmra.mrb[0].mxu0 %v306
    %v592 = vpop.f32.mrb[0].mxu0
    %v593 = vadd.f32 0.0, %v592
    %v594 = vpop.f32.mrb[0].mxu0
    %v595 = vpop.f32.mrb[0].mxu0
    %v596 = vadd.f32 0.0, %v595
    %v597 = vpop.f32.mrb[0].mxu0
    %598 = vmatprep.mubr.bf16.mxu0 0
    %599 = vmatmul.mubr.bf16.gmra.mrb[0].mxu0 %v307
    %v600 = vpop.f32.mrb[0].mxu0
    %v601 = vadd.f32 0.0, %v600
    %v602 = vpop.f32.mrb[0].mxu0
    %v603 = vpop.f32.mrb[0].mxu0
    %v604 = vadd.f32 0.0, %v603
    %v605 = vpop.f32.mrb[0].mxu0
    %606 = vmatprep.mubr.bf16.mxu0 0
    %607 = vmatmul.mubr.bf16.gmra.mrb[0].mxu0 %v308
    %v608 = vpop.f32.mrb[0].mxu0
    %v609 = vadd.f32 0.0, %v608
    %v610 = vpop.f32.mrb[0].mxu0
    %v611 = vpop.f32.mrb[0].mxu0
    %v612 = vadd.f32 0.0, %v611
    %v613 = vpop.f32.mrb[0].mxu0
    %614 = vmatprep.mubr.bf16.mxu0 0
    %615 = vmatmul.mubr.bf16.gmra.mrb[0].mxu0 %v309
    %v616 = vpop.f32.mrb[0].mxu0
    %v617 = vadd.f32 0.0, %v616
    %v618 = vpop.f32.mrb[0].mxu0
    %v619 = vpop.f32.mrb[0].mxu0
    %v620 = vadd.f32 0.0, %v619
    %v621 = vpop.f32.mrb[0].mxu0
    %622 = vmatprep.mubr.bf16.mxu0 0
    %623 = vmatmul.mubr.bf16.gmra.mrb[0].mxu0 %v310
    %v624 = vpop.f32.mrb[0].mxu0
    %v625 = vadd.f32 0.0, %v624
    %v626 = vpop.f32.mrb[0].mxu0
    %v627 = vpop.f32.mrb[0].mxu0
    %v628 = vadd.f32 0.0, %v627
    %v629 = vpop.f32.mrb[0].mxu0
    %630 = vmatprep.mubr.bf16.mxu0 0
    %631 = vmatmul.mubr.bf16.gmra.mrb[0].mxu0 %v311
    %v632 = vpop.f32.mrb[0].mxu0
    %v633 = vadd.f32 0.0, %v632
    %v634 = vpop.f32.mrb[0].mxu0
    %v635 = vpop.f32.mrb[0].mxu0
    %v636 = vadd.f32 0.0, %v635
    %v637 = vpop.f32.mrb[0].mxu0
    %638 = vmatprep.mubr.bf16.mxu0 0
    %639 = vmatmul.mubr.bf16.gmra.mrb[0].mxu0 %v312
    %v640 = vpop.f32.mrb[0].mxu0
    %v641 = vadd.f32 0.0, %v640
    %v642 = vpop.f32.mrb[0].mxu0
    %v643 = vpop.f32.mrb[0].mxu0
    %v644 = vadd.f32 0.0, %v643
    %v645 = vpop.f32.mrb[0].mxu0
    %646 = vmatprep.mubr.bf16.mxu0 0
    %647 = vmatmul.mubr.bf16.gmra.mrb[0].mxu0 %v313
    %v648 = vpop.f32.mrb[0].mxu0
    %v649 = vadd.f32 0.0, %v648
    %v650 = vpop.f32.mrb[0].mxu0
    %v651 = vpop.f32.mrb[0].mxu0
    %v652 = vadd.f32 0.0, %v651
    %v653 = vpop.f32.mrb[0].mxu0
    %654 = vmatprep.mubr.bf16.mxu0 0
    %655 = vmatmul.mubr.bf16.gmra.mrb[0].mxu0 %v314
    %v656 = vpop.f32.mrb[0].mxu0
    %v657 = vadd.f32 0.0, %v656
    %v658 = vpop.f32.mrb[0].mxu0
    %v659 = vpop.f32.mrb[0].mxu0
    %v660 = vadd.f32 0.0, %v659
    %v661 = vpop.f32.mrb[0].mxu0
    %662 = vmatprep.mubr.bf16.mxu0 0
    %663 = vmatmul.mubr.bf16.gmra.mrb[0].mxu0 %v315
    %v664 = vpop.f32.mrb[0].mxu0
    %v665 = vadd.f32 0.0, %v664
    %v666 = vpop.f32.mrb[0].mxu0
    %v667 = vpop.f32.mrb[0].mxu0
    %v668 = vadd.f32 0.0, %v667
    %v669 = vpop.f32.mrb[0].mxu0
    %670 = vmatprep.mubr.bf16.mxu0 0
    %671 = vmatmul.mubr.bf16.gmra.mrb[0].mxu0 %v316
    %v672 = vpop.f32.mrb[0].mxu0
    %v673 = vadd.f32 0.0, %v672
    %v674 = vpop.f32.mrb[0].mxu0
    %v675 = vpop.f32.mrb[0].mxu0
    %v676 = vadd.f32 0.0, %v675
    %v677 = vpop.f32.mrb[0].mxu0
    %678 = vmatprep.mubr.bf16.mxu0 0
    %679 = vmatmul.mubr.bf16.gmra.mrb[0].mxu0 %v317
    %v680 = vpop.f32.mrb[0].mxu0
    %v681 = vadd.f32 0.0, %v680
    %v682 = vpop.f32.mrb[0].mxu0
    %v683 = vpop.f32.mrb[0].mxu0
    %v684 = vadd.f32 0.0, %v683
    %v685 = vpop.f32.mrb[0].mxu0
    %686 = vdwg.mxu0
    %687 = vst [vmem:[#allocation10] sm:$0xff] %v433
    %688 = vst [vmem:[#allocation10 + $0x8] sm:$0xff] %v436
    %689 = vst [vmem:[#allocation10 + $0x10] sm:$0xff] %v441
    %690 = vst [vmem:[#allocation10 + $0x18] sm:$0xff] %v444
    %691 = vst [vmem:[#allocation10 + $0x20] sm:$0xff] %v449
    %692 = vst [vmem:[#allocation10 + $0x28] sm:$0xff] %v452
    %693 = vst [vmem:[#allocation10 + $0x30] sm:$0xff] %v457
    %694 = vst [vmem:[#allocation10 + $0x38] sm:$0xff] %v460
    %695 = vst [vmem:[#allocation10 + $0x40] sm:$0xff] %v465
    %696 = vst [vmem:[#allocation10 + $0x48] sm:$0xff] %v468
    %697 = vst [vmem:[#allocation10 + $0x50] sm:$0xff] %v473
    %698 = vst [vmem:[#allocation10 + $0x58] sm:$0xff] %v476
    %699 = vst [vmem:[#allocation10 + $0x60] sm:$0xff] %v481
    %700 = vst [vmem:[#allocation10 + $0x68] sm:$0xff] %v484
    %701 = vst [vmem:[#allocation10 + $0x70] sm:$0xff] %v489
    %702 = vst [vmem:[#allocation10 + $0x78] sm:$0xff] %v492
    %703 = vst [vmem:[#allocation10 + $0x80] sm:$0xff] %v497
    %704 = vst [vmem:[#allocation10 + $0x88] sm:$0xff] %v500
    %705 = vst [vmem:[#allocation10 + $0x90] sm:$0xff] %v505
    %706 = vst [vmem:[#allocation10 + $0x98] sm:$0xff] %v508
    %707 = vst [vmem:[#allocation10 + $0xa0] sm:$0xff] %v513
    %708 = vst [vmem:[#allocation10 + $0xa8] sm:$0xff] %v516
    %709 = vst [vmem:[#allocation10 + $0xb0] sm:$0xff] %v521
    %710 = vst [vmem:[#allocation10 + $0xb8] sm:$0xff] %v524
    %711 = vst [vmem:[#allocation10 + $0xc0] sm:$0xff] %v529
    %712 = vst [vmem:[#allocation10 + $0xc8] sm:$0xff] %v532
    %713 = vst [vmem:[#allocation10 + $0xd0] sm:$0xff] %v537
    %714 = vst [vmem:[#allocation10 + $0xd8] sm:$0xff] %v540
    %715 = vst [vmem:[#allocation10 + $0xe0] sm:$0xff] %v545
    %716 = vst [vmem:[#allocation10 + $0xe8] sm:$0xff] %v548
    %717 = vst [vmem:[#allocation10 + $0xf0] sm:$0xff] %v553
    %718 = vst [vmem:[#allocation10 + $0xf8] sm:$0xff] %v556
    %719 = vst [vmem:[#allocation10 + $0x100] sm:$0xff] %v561
    %720 = vst [vmem:[#allocation10 + $0x108] sm:$0xff] %v564
    %721 = vst [vmem:[#allocation10 + $0x110] sm:$0xff] %v569
    %722 = vst [vmem:[#allocation10 + $0x118] sm:$0xff] %v572
    %723 = vst [vmem:[#allocation10 + $0x120] sm:$0xff] %v577
    %724 = vst [vmem:[#allocation10 + $0x128] sm:$0xff] %v580
    %725 = vst [vmem:[#allocation10 + $0x130] sm:$0xff] %v585
    %726 = vst [vmem:[#allocation10 + $0x138] sm:$0xff] %v588
    %727 = vst [vmem:[#allocation10 + $0x140] sm:$0xff] %v593
    %728 = vst [vmem:[#allocation10 + $0x148] sm:$0xff] %v596
    %729 = vst [vmem:[#allocation10 + $0x150] sm:$0xff] %v601
    %730 = vst [vmem:[#allocation10 + $0x158] sm:$0xff] %v604
    %731 = vst [vmem:[#allocation10 + $0x160] sm:$0xff] %v609
    %732 = vst [vmem:[#allocation10 + $0x168] sm:$0xff] %v612
    %733 = vst [vmem:[#allocation10 + $0x170] sm:$0xff] %v617
    %734 = vst [vmem:[#allocation10 + $0x178] sm:$0xff] %v620
    %735 = vst [vmem:[#allocation10 + $0x180] sm:$0xff] %v625
    %736 = vst [vmem:[#allocation10 + $0x188] sm:$0xff] %v628
    %737 = vst [vmem:[#allocation10 + $0x190] sm:$0xff] %v633
    %738 = vst [vmem:[#allocation10 + $0x198] sm:$0xff] %v636
    %739 = vst [vmem:[#allocation10 + $0x1a0] sm:$0xff] %v641
    %740 = vst [vmem:[#allocation10 + $0x1a8] sm:$0xff] %v644
    %741 = vst [vmem:[#allocation10 + $0x1b0] sm:$0xff] %v649
    %742 = vst [vmem:[#allocation10 + $0x1b8] sm:$0xff] %v652
    %743 = vst [vmem:[#allocation10 + $0x1c0] sm:$0xff] %v657
    %744 = vst [vmem:[#allocation10 + $0x1c8] sm:$0xff] %v660
    %745 = vst [vmem:[#allocation10 + $0x1d0] sm:$0xff] %v665
    %746 = vst [vmem:[#allocation10 + $0x1d8] sm:$0xff] %v668
    %747 = vst [vmem:[#allocation10 + $0x1e0] sm:$0xff] %v673
    %748 = vst [vmem:[#allocation10 + $0x1e8] sm:$0xff] %v676
    %749 = vst [vmem:[#allocation10 + $0x1f0] sm:$0xff] %v681
    %750 = vst [vmem:[#allocation10 + $0x1f8] sm:$0xff] %v684
    %v751 = vadd.f32 %v433, %v436
    %v752 = vadd.f32 %v751, %v441
    %v753 = vadd.f32 %v752, %v444
    %v754 = vadd.f32 %v753, %v449
    %v755 = vadd.f32 %v754, %v452
    %v756 = vadd.f32 %v755, %v457
    %v757 = vadd.f32 %v756, %v460
    %v758 = vadd.f32 %v757, %v465
    %v759 = vadd.f32 %v758, %v468
    %v760 = vadd.f32 %v759, %v473
    %v761 = vadd.f32 %v760, %v476
    %v762 = vadd.f32 %v761, %v481
    %v763 = vadd.f32 %v762, %v484
    %v764 = vadd.f32 %v763, %v489
    %v765 = vadd.f32 %v764, %v492
    %v766 = vadd.f32 %v765, %v497
    %v767 = vadd.f32 %v766, %v500
    %v768 = vadd.f32 %v767, %v505
    %v769 = vadd.f32 %v768, %v508
    %v770 = vadd.f32 %v769, %v513
    %v771 = vadd.f32 %v770, %v516
    %v772 = vadd.f32 %v771, %v521
    %v773 = vadd.f32 %v772, %v524
    %v774 = vadd.f32 %v773, %v529
    %v775 = vadd.f32 %v774, %v532
    %v776 = vadd.f32 %v775, %v537
    %v777 = vadd.f32 %v776, %v540
    %v778 = vadd.f32 %v777, %v545
    %v779 = vadd.f32 %v778, %v548
    %v780 = vadd.f32 %v779, %v553
    %v781 = vadd.f32 %v780, %v556
    %v782 = vadd.f32 %v781, %v561
    %v783 = vadd.f32 %v782, %v564
    %v784 = vadd.f32 %v783, %v569
    %v785 = vadd.f32 %v784, %v572
    %v786 = vadd.f32 %v785, %v577
    %v787 = vadd.f32 %v786, %v580
    %v788 = vadd.f32 %v787, %v585
    %v789 = vadd.f32 %v788, %v588
    %v790 = vadd.f32 %v789, %v593
    %v791 = vadd.f32 %v790, %v596
    %v792 = vadd.f32 %v791, %v601
    %v793 = vadd.f32 %v792, %v604
    %v794 = vadd.f32 %v793, %v609
    %v795 = vadd.f32 %v794, %v612
    %v796 = vadd.f32 %v795, %v617
    %v797 = vadd.f32 %v796, %v620
    %v798 = vadd.f32 %v797, %v625
    %v799 = vadd.f32 %v798, %v628
    %v800 = vadd.f32 %v799, %v633
    %v801 = vadd.f32 %v800, %v636
    %v802 = vadd.f32 %v801, %v641
    %v803 = vadd.f32 %v802, %v644
    %v804 = vadd.f32 %v803, %v649
    %v805 = vadd.f32 %v804, %v652
    %v806 = vadd.f32 %v805, %v657
    %v807 = vadd.f32 %v806, %v660
    %v808 = vadd.f32 %v807, %v665
    %v809 = vadd.f32 %v808, %v668
    %v810 = vadd.f32 %v809, %v673
    %v811 = vadd.f32 %v810, %v676
    %v812 = vadd.f32 %v811, %v681
    %v813 = vadd.f32 %v812, %v684
    %v814 = vrot.slane %v813, 4
    %v815 = vadd.f32 %v813, %v814
    %v816 = vrot.slane %v815, 2
    %v817 = vadd.f32 %v815, %v816
    %v818 = vrot.slane %v817, 1
    %v819 = vadd.f32 %v817, %v818
    %v820 = vmul.f32 %v433, %v433
    %v821 = vmul.f32 %v436, %v436
    %v822 = vmul.f32 %v441, %v441
    %v823 = vmul.f32 %v444, %v444
    %v824 = vmul.f32 %v449, %v449
    %v825 = vmul.f32 %v452, %v452
    %v826 = vmul.f32 %v457, %v457
    %v827 = vmul.f32 %v460, %v460
    %v828 = vmul.f32 %v465, %v465
    %v829 = vmul.f32 %v468, %v468
    %v830 = vmul.f32 %v473, %v473
    %v831 = vmul.f32 %v476, %v476
    %v832 = vmul.f32 %v481, %v481
    %v833 = vmul.f32 %v484, %v484
    %v834 = vmul.f32 %v489, %v489
    %v835 = vmul.f32 %v492, %v492
    %v836 = vmul.f32 %v497, %v497
    %v837 = vmul.f32 %v500, %v500
    %v838 = vmul.f32 %v505, %v505
    %v839 = vmul.f32 %v508, %v508
    %v840 = vmul.f32 %v513, %v513
    %v841 = vmul.f32 %v516, %v516
    %v842 = vmul.f32 %v521, %v521
    %v843 = vmul.f32 %v524, %v524
    %v844 = vmul.f32 %v529, %v529
    %v845 = vmul.f32 %v532, %v532
    %v846 = vmul.f32 %v537, %v537
    %v847 = vmul.f32 %v540, %v540
    %v848 = vmul.f32 %v545, %v545
    %v849 = vmul.f32 %v548, %v548
    %v850 = vmul.f32 %v553, %v553
    %v851 = vmul.f32 %v556, %v556
    %v852 = vmul.f32 %v561, %v561
    %v853 = vmul.f32 %v564, %v564
    %v854 = vmul.f32 %v569, %v569
    %v855 = vmul.f32 %v572, %v572
    %v856 = vmul.f32 %v577, %v577
    %v857 = vmul.f32 %v580, %v580
    %v858 = vmul.f32 %v585, %v585
    %v859 = vmul.f32 %v588, %v588
    %v860 = vmul.f32 %v593, %v593
    %v861 = vmul.f32 %v596, %v596
    %v862 = vmul.f32 %v601, %v601
    %v863 = vmul.f32 %v604, %v604
    %v864 = vmul.f32 %v609, %v609
    %v865 = vmul.f32 %v612, %v612
    %v866 = vmul.f32 %v617, %v617
    %v867 = vmul.f32 %v620, %v620
    %v868 = vmul.f32 %v625, %v625
    %v869 = vmul.f32 %v628, %v628
    %v870 = vmul.f32 %v633, %v633
    %v871 = vmul.f32 %v636, %v636
    %v872 = vmul.f32 %v641, %v641
    %v873 = vmul.f32 %v644, %v644
    %v874 = vmul.f32 %v649, %v649
    %v875 = vmul.f32 %v652, %v652
    %v876 = vmul.f32 %v657, %v657
    %v877 = vmul.f32 %v660, %v660
    %v878 = vmul.f32 %v665, %v665
    %v879 = vmul.f32 %v668, %v668
    %v880 = vmul.f32 %v673, %v673
    %v881 = vmul.f32 %v676, %v676
    %v882 = vmul.f32 %v681, %v681
    %v883 = vmul.f32 %v684, %v684
    %v884 = vadd.f32 %v820, %v821
    %v885 = vadd.f32 %v884, %v822
    %v886 = vadd.f32 %v885, %v823
    %v887 = vadd.f32 %v886, %v824
    %v888 = vadd.f32 %v887, %v825
    %v889 = vadd.f32 %v888, %v826
    %v890 = vadd.f32 %v889, %v827
    %v891 = vadd.f32 %v890, %v828
    %v892 = vadd.f32 %v891, %v829
    %v893 = vadd.f32 %v892, %v830
    %v894 = vadd.f32 %v893, %v831
    %v895 = vadd.f32 %v894, %v832
    %v896 = vadd.f32 %v895, %v833
    %v897 = vadd.f32 %v896, %v834
    %v898 = vadd.f32 %v897, %v835
    %v899 = vadd.f32 %v898, %v836
    %v900 = vadd.f32 %v899, %v837
    %v901 = vadd.f32 %v900, %v838
    %v902 = vadd.f32 %v901, %v839
    %v903 = vadd.f32 %v902, %v840
    %v904 = vadd.f32 %v903, %v841
    %v905 = vadd.f32 %v904, %v842
    %v906 = vadd.f32 %v905, %v843
    %v907 = vadd.f32 %v906, %v844
    %v908 = vadd.f32 %v907, %v845
    %v909 = vadd.f32 %v908, %v846
    %v910 = vadd.f32 %v909, %v847
    %v911 = vadd.f32 %v910, %v848
    %v912 = vadd.f32 %v911, %v849
    %v913 = vadd.f32 %v912, %v850
    %v914 = vadd.f32 %v913, %v851
    %v915 = vadd.f32 %v914, %v852
    %v916 = vadd.f32 %v915, %v853
    %v917 = vadd.f32 %v916, %v854
    %v918 = vadd.f32 %v917, %v855
    %v919 = vadd.f32 %v918, %v856
    %v920 = vadd.f32 %v919, %v857
    %v921 = vadd.f32 %v920, %v858
    %v922 = vadd.f32 %v921, %v859
    %v923 = vadd.f32 %v922, %v860
    %v924 = vadd.f32 %v923, %v861
    %v925 = vadd.f32 %v924, %v862
    %v926 = vadd.f32 %v925, %v863
    %v927 = vadd.f32 %v926, %v864
    %v928 = vadd.f32 %v927, %v865
    %v929 = vadd.f32 %v928, %v866
    %v930 = vadd.f32 %v929, %v867
    %v931 = vadd.f32 %v930, %v868
    %v932 = vadd.f32 %v931, %v869
    %v933 = vadd.f32 %v932, %v870
    %v934 = vadd.f32 %v933, %v871
    %v935 = vadd.f32 %v934, %v872
    %v936 = vadd.f32 %v935, %v873
    %v937 = vadd.f32 %v936, %v874
    %v938 = vadd.f32 %v937, %v875
    %v939 = vadd.f32 %v938, %v876
    %v940 = vadd.f32 %v939, %v877
    %v941 = vadd.f32 %v940, %v878
    %v942 = vadd.f32 %v941, %v879
    %v943 = vadd.f32 %v942, %v880
    %v944 = vadd.f32 %v943, %v881
    %v945 = vadd.f32 %v944, %v882
    %v946 = vadd.f32 %v945, %v883
    %v947 = vrot.slane %v946, 4
    %v948 = vadd.f32 %v946, %v947
    %v949 = vrot.slane %v948, 2
    %v950 = vadd.f32 %v948, %v949
    %v951 = vrot.slane %v950, 1
    %v952 = vadd.f32 %v950, %v951
    %v953 = vld [vmem:[#allocation7] sm:$0xf]
    %v954 = vld [vmem:[#allocation7 + $0x4] sm:$0xf]
    %v955 = vld [vmem:[#allocation7 + $0x8] sm:$0xf]
    %v956 = vld [vmem:[#allocation7 + $0xc] sm:$0xf]
    %v957 = vld [vmem:[#allocation7 + $0x10] sm:$0xf]
    %v958 = vld [vmem:[#allocation7 + $0x14] sm:$0xf]
    %v959 = vld [vmem:[#allocation7 + $0x18] sm:$0xf]
    %v960 = vld [vmem:[#allocation7 + $0x1c] sm:$0xf]
    %v961 = vld [vmem:[#allocation7 + $0x20] sm:$0xf]
    %v962 = vld [vmem:[#allocation7 + $0x24] sm:$0xf]
    %v963 = vld [vmem:[#allocation7 + $0x28] sm:$0xf]
    %v964 = vld [vmem:[#allocation7 + $0x2c] sm:$0xf]
    %v965 = vld [vmem:[#allocation7 + $0x30] sm:$0xf]
    %v966 = vld [vmem:[#allocation7 + $0x34] sm:$0xf]
    %v967 = vld [vmem:[#allocation7 + $0x38] sm:$0xf]
    %v968 = vld [vmem:[#allocation7 + $0x3c] sm:$0xf]
    %v969 = vld [vmem:[#allocation7 + $0x40] sm:$0xf]
    %v970 = vld [vmem:[#allocation7 + $0x44] sm:$0xf]
    %v971 = vld [vmem:[#allocation7 + $0x48] sm:$0xf]
    %v972 = vld [vmem:[#allocation7 + $0x4c] sm:$0xf]
    %v973 = vld [vmem:[#allocation7 + $0x50] sm:$0xf]
    %v974 = vld [vmem:[#allocation7 + $0x54] sm:$0xf]
    %v975 = vld [vmem:[#allocation7 + $0x58] sm:$0xf]
    %v976 = vld [vmem:[#allocation7 + $0x5c] sm:$0xf]
    %v977 = vld [vmem:[#allocation7 + $0x60] sm:$0xf]
    %v978 = vld [vmem:[#allocation7 + $0x64] sm:$0xf]
    %v979 = vld [vmem:[#allocation7 + $0x68] sm:$0xf]
    %v980 = vld [vmem:[#allocation7 + $0x6c] sm:$0xf]
    %v981 = vld [vmem:[#allocation7 + $0x70] sm:$0xf]
    %v982 = vld [vmem:[#allocation7 + $0x74] sm:$0xf]
    %v983 = vld [vmem:[#allocation7 + $0x78] sm:$0xf]
    %v984 = vld [vmem:[#allocation7 + $0x7c] sm:$0xf]
    %v985 = vld [vmem:[#allocation7 + $0x80] sm:$0xf]
    %v986 = vld [vmem:[#allocation7 + $0x84] sm:$0xf]
    %v987 = vld [vmem:[#allocation7 + $0x88] sm:$0xf]
    %v988 = vld [vmem:[#allocation7 + $0x8c] sm:$0xf]
    %v989 = vld [vmem:[#allocation7 + $0x90] sm:$0xf]
    %v990 = vld [vmem:[#allocation7 + $0x94] sm:$0xf]
    %v991 = vld [vmem:[#allocation7 + $0x98] sm:$0xf]
    %v992 = vld [vmem:[#allocation7 + $0x9c] sm:$0xf]
    %v993 = vld [vmem:[#allocation7 + $0xa0] sm:$0xf]
    %v994 = vld [vmem:[#allocation7 + $0xa4] sm:$0xf]
    %v995 = vld [vmem:[#allocation7 + $0xa8] sm:$0xf]
    %v996 = vld [vmem:[#allocation7 + $0xac] sm:$0xf]
    %v997 = vld [vmem:[#allocation7 + $0xb0] sm:$0xf]
    %v998 = vld [vmem:[#allocation7 + $0xb4] sm:$0xf]
    %v999 = vld [vmem:[#allocation7 + $0xb8] sm:$0xf]
    %v1000 = vld [vmem:[#allocation7 + $0xbc] sm:$0xf]
    %v1001 = vld [vmem:[#allocation7 + $0xc0] sm:$0xf]
    %v1002 = vld [vmem:[#allocation7 + $0xc4] sm:$0xf]
    %v1003 = vld [vmem:[#allocation7 + $0xc8] sm:$0xf]
    %v1004 = vld [vmem:[#allocation7 + $0xcc] sm:$0xf]
    %v1005 = vld [vmem:[#allocation7 + $0xd0] sm:$0xf]
    %v1006 = vld [vmem:[#allocation7 + $0xd4] sm:$0xf]
    %v1007 = vld [vmem:[#allocation7 + $0xd8] sm:$0xf]
    %v1008 = vld [vmem:[#allocation7 + $0xdc] sm:$0xf]
    %v1009 = vld [vmem:[#allocation7 + $0xe0] sm:$0xf]
    %v1010 = vld [vmem:[#allocation7 + $0xe4] sm:$0xf]
    %v1011 = vld [vmem:[#allocation7 + $0xe8] sm:$0xf]
    %v1012 = vld [vmem:[#allocation7 + $0xec] sm:$0xf]
    %v1013 = vld [vmem:[#allocation7 + $0xf0] sm:$0xf]
    %v1014 = vld [vmem:[#allocation7 + $0xf4] sm:$0xf]
    %v1015 = vld [vmem:[#allocation7 + $0xf8] sm:$0xf]
    %v1016 = vld [vmem:[#allocation7 + $0xfc] sm:$0xf]
    %v1017 = vld [vmem:[#allocation8] sm:$0xf]
    %v1018 = vld [vmem:[#allocation8 + $0x4] sm:$0xf]
    %v1019 = vld [vmem:[#allocation8 + $0x8] sm:$0xf]
    %v1020 = vld [vmem:[#allocation8 + $0xc] sm:$0xf]
    %v1021 = vld [vmem:[#allocation8 + $0x10] sm:$0xf]
    %v1022 = vld [vmem:[#allocation8 + $0x14] sm:$0xf]
    %v1023 = vld [vmem:[#allocation8 + $0x18] sm:$0xf]
    %v1024 = vld [vmem:[#allocation8 + $0x1c] sm:$0xf]
    %v1025 = vld [vmem:[#allocation8 + $0x20] sm:$0xf]
    %v1026 = vld [vmem:[#allocation8 + $0x24] sm:$0xf]
    %v1027 = vld [vmem:[#allocation8 + $0x28] sm:$0xf]
    %v1028 = vld [vmem:[#allocation8 + $0x2c] sm:$0xf]
    %v1029 = vld [vmem:[#allocation8 + $0x30] sm:$0xf]
    %v1030 = vld [vmem:[#allocation8 + $0x34] sm:$0xf]
    %v1031 = vld [vmem:[#allocation8 + $0x38] sm:$0xf]
    %v1032 = vld [vmem:[#allocation8 + $0x3c] sm:$0xf]
    %v1097 = vunpack.c.l.b16 %v953
    %v1098 = vunpack.c.l.b16 %v954
    %v1099 = vunpack.c.l.b16 %v955
    %v1100 = vunpack.c.l.b16 %v956
    %v1101 = vunpack.c.l.b16 %v957
    %v1102 = vunpack.c.l.b16 %v958
    %v1103 = vunpack.c.l.b16 %v959
    %v1104 = vunpack.c.l.b16 %v960
    %v1105 = vunpack.c.l.b16 %v961
    %v1106 = vunpack.c.l.b16 %v962
    %v1107 = vunpack.c.l.b16 %v963
    %v1108 = vunpack.c.l.b16 %v964
    %v1109 = vunpack.c.l.b16 %v965
    %v1110 = vunpack.c.l.b16 %v966
    %v1111 = vunpack.c.l.b16 %v967
    %v1112 = vunpack.c.l.b16 %v968
    %v1113 = vunpack.c.l.b16 %v969
    %v1114 = vunpack.c.l.b16 %v970
    %v1115 = vunpack.c.l.b16 %v971
    %v1116 = vunpack.c.l.b16 %v972
    %v1117 = vunpack.c.l.b16 %v973
    %v1118 = vunpack.c.l.b16 %v974
    %v1119 = vunpack.c.l.b16 %v975
    %v1120 = vunpack.c.l.b16 %v976
    %v1121 = vunpack.c.l.b16 %v977
    %v1122 = vunpack.c.l.b16 %v978
    %v1123 = vunpack.c.l.b16 %v979
    %v1124 = vunpack.c.l.b16 %v980
    %v1125 = vunpack.c.l.b16 %v981
    %v1126 = vunpack.c.l.b16 %v982
    %v1127 = vunpack.c.l.b16 %v983
    %v1128 = vunpack.c.l.b16 %v984
    %v1129 = vunpack.c.l.b16 %v985
    %v1130 = vunpack.c.l.b16 %v986
    %v1131 = vunpack.c.l.b16 %v987
    %v1132 = vunpack.c.l.b16 %v988
    %v1133 = vunpack.c.l.b16 %v989
    %v1134 = vunpack.c.l.b16 %v990
    %v1135 = vunpack.c.l.b16 %v991
    %v1136 = vunpack.c.l.b16 %v992
    %v1137 = vunpack.c.l.b16 %v993
    %v1138 = vunpack.c.l.b16 %v994
    %v1139 = vunpack.c.l.b16 %v995
    %v1140 = vunpack.c.l.b16 %v996
    %v1141 = vunpack.c.l.b16 %v997
    %v1142 = vunpack.c.l.b16 %v998
    %v1143 = vunpack.c.l.b16 %v999
    %v1144 = vunpack.c.l.b16 %v1000
    %v1145 = vunpack.c.l.b16 %v1001
    %v1146 = vunpack.c.l.b16 %v1002
    %v1147 = vunpack.c.l.b16 %v1003
    %v1148 = vunpack.c.l.b16 %v1004
    %v1149 = vunpack.c.l.b16 %v1005
    %v1150 = vunpack.c.l.b16 %v1006
    %v1151 = vunpack.c.l.b16 %v1007
    %v1152 = vunpack.c.l.b16 %v1008
    %v1153 = vunpack.c.l.b16 %v1009
    %v1154 = vunpack.c.l.b16 %v1010
    %v1155 = vunpack.c.l.b16 %v1011
    %v1156 = vunpack.c.l.b16 %v1012
    %v1157 = vunpack.c.l.b16 %v1013
    %v1158 = vunpack.c.l.b16 %v1014
    %v1159 = vunpack.c.l.b16 %v1015
    %v1160 = vunpack.c.l.b16 %v1016
    %v1161 = vpack.c.b16 %v1098, %v1097
    %v1162 = vpack.c.b16 %v1100, %v1099
    %v1163 = vpack.c.b16 %v1102, %v1101
    %v1164 = vpack.c.b16 %v1104, %v1103
    %v1165 = vpack.c.b16 %v1106, %v1105
    %v1166 = vpack.c.b16 %v1108, %v1107
    %v1167 = vpack.c.b16 %v1110, %v1109
    %v1168 = vpack.c.b16 %v1112, %v1111
    %v1169 = vpack.c.b16 %v1114, %v1113
    %v1170 = vpack.c.b16 %v1116, %v1115
    %v1171 = vpack.c.b16 %v1118, %v1117
    %v1172 = vpack.c.b16 %v1120, %v1119
    %v1173 = vpack.c.b16 %v1122, %v1121
    %v1174 = vpack.c.b16 %v1124, %v1123
    %v1175 = vpack.c.b16 %v1126, %v1125
    %v1176 = vpack.c.b16 %v1128, %v1127
    %v1177 = vpack.c.b16 %v1130, %v1129
    %v1178 = vpack.c.b16 %v1132, %v1131
    %v1179 = vpack.c.b16 %v1134, %v1133
    %v1180 = vpack.c.b16 %v1136, %v1135
    %v1181 = vpack.c.b16 %v1138, %v1137
    %v1182 = vpack.c.b16 %v1140, %v1139
    %v1183 = vpack.c.b16 %v1142, %v1141
    %v1184 = vpack.c.b16 %v1144, %v1143
    %v1185 = vpack.c.b16 %v1146, %v1145
    %v1186 = vpack.c.b16 %v1148, %v1147
    %v1187 = vpack.c.b16 %v1150, %v1149
    %v1188 = vpack.c.b16 %v1152, %v1151
    %v1189 = vpack.c.b16 %v1154, %v1153
    %v1190 = vpack.c.b16 %v1156, %v1155
    %v1191 = vpack.c.b16 %v1158, %v1157
    %v1192 = vpack.c.b16 %v1160, %v1159
    %v1241 = vunpack.c.l.b16 %v1017
    %v1242 = vunpack.c.l.b16 %v1018
    %v1243 = vunpack.c.l.b16 %v1019
    %v1244 = vunpack.c.l.b16 %v1020
    %v1245 = vunpack.c.l.b16 %v1021
    %v1246 = vunpack.c.l.b16 %v1022
    %v1247 = vunpack.c.l.b16 %v1023
    %v1248 = vunpack.c.l.b16 %v1024
    %v1249 = vunpack.c.l.b16 %v1025
    %v1250 = vunpack.c.l.b16 %v1026
    %v1251 = vunpack.c.l.b16 %v1027
    %v1252 = vunpack.c.l.b16 %v1028
    %v1253 = vunpack.c.l.b16 %v1029
    %v1254 = vunpack.c.l.b16 %v1030
    %v1255 = vunpack.c.l.b16 %v1031
    %v1256 = vunpack.c.l.b16 %v1032
    %v1257 = vpack.c.b16 %v1242, %v1241
    %v1258 = vpack.c.b16 %v1244, %v1243
    %v1259 = vpack.c.b16 %v1246, %v1245
    %v1260 = vpack.c.b16 %v1248, %v1247
    %v1261 = vpack.c.b16 %v1250, %v1249
    %v1262 = vpack.c.b16 %v1252, %v1251
    %v1263 = vpack.c.b16 %v1254, %v1253
    %v1264 = vpack.c.b16 %v1256, %v1255
    %1273 = vmatprep.subr.bf16.mxu0 0
    %1274 = vmatpush1.bf16.msra.mxu0 %v1257
    %1275 = vmatprep.subr.bf16.mxu0 0
    %1276 = vmatpush1.bf16.msra.mxu0 %v1258
    %1277 = vmatprep.subr.bf16.mxu0 0
    %1278 = vmatpush1.bf16.msra.mxu0 %v1259
    %1279 = vmatprep.subr.bf16.mxu0 0
    %1280 = vmatpush1.bf16.msra.mxu0 %v1260
    %1281 = vmatprep.subr.bf16.mxu0 0
    %1282 = vmatpush1.bf16.msra.mxu0 %v1261
    %1283 = vmatprep.subr.bf16.mxu0 0
    %1284 = vmatpush1.bf16.msra.mxu0 %v1262
    %1285 = vmatprep.subr.bf16.mxu0 0
    %1286 = vmatpush1.bf16.msra.mxu0 %v1263
    %1287 = vmatprep.subr.bf16.mxu0 0
    %1288 = vmatpush1.bf16.msra.mxu0 %v1264
    %1289 = vmatprep.subr.bf16.mxu0 0
    %1290 = vmatpush1.bf16.msra.mxu0 0
    %1291 = vmatprep.subr.bf16.mxu0 0
    %1292 = vmatpush1.bf16.msra.mxu0 0
    %1293 = vmatprep.subr.bf16.mxu0 0
    %1294 = vmatpush1.bf16.msra.mxu0 0
    %1295 = vmatprep.subr.bf16.mxu0 0
    %1296 = vmatpush1.bf16.msra.mxu0 0
    %1297 = vmatprep.subr.bf16.mxu0 0
    %1298 = vmatpush1.bf16.msra.mxu0 0
    %1299 = vmatprep.subr.bf16.mxu0 0
    %1300 = vmatpush1.bf16.msra.mxu0 0
    %1301 = vmatprep.subr.bf16.mxu0 0
    %1302 = vmatpush1.bf16.msra.mxu0 0
    %1303 = vmatprep.subr.bf16.mxu0 0
    %1304 = vmatpush1.bf16.msra.mxu0 0
    %1305 = vmatprep.mubr.bf16.mxu0 0
    %1306 = vmatmul.mubr.bf16.gmra.mrb[0].mxu0 %v1161
    %v1307 = vpop.f32.mrb[0].mxu0
    %v1308 = vadd.f32 0.0, %v1307
    %v1309 = vpop.f32.mrb[0].mxu0
    %v1310 = vpop.f32.mrb[0].mxu0
    %v1311 = vadd.f32 0.0, %v1310
    %v1312 = vpop.f32.mrb[0].mxu0
    %1313 = vmatprep.mubr.bf16.mxu0 0
    %1314 = vmatmul.mubr.bf16.gmra.mrb[0].mxu0 %v1162
    %v1315 = vpop.f32.mrb[0].mxu0
    %v1316 = vadd.f32 0.0, %v1315
    %v1317 = vpop.f32.mrb[0].mxu0
    %v1318 = vpop.f32.mrb[0].mxu0
    %v1319 = vadd.f32 0.0, %v1318
    %v1320 = vpop.f32.mrb[0].mxu0
    %1321 = vmatprep.mubr.bf16.mxu0 0
    %1322 = vmatmul.mubr.bf16.gmra.mrb[0].mxu0 %v1163
    %v1323 = vpop.f32.mrb[0].mxu0
    %v1324 = vadd.f32 0.0, %v1323
    %v1325 = vpop.f32.mrb[0].mxu0
    %v1326 = vpop.f32.mrb[0].mxu0
    %v1327 = vadd.f32 0.0, %v1326
    %v1328 = vpop.f32.mrb[0].mxu0
    %1329 = vmatprep.mubr.bf16.mxu0 0
    %1330 = vmatmul.mubr.bf16.gmra.mrb[0].mxu0 %v1164
    %v1331 = vpop.f32.mrb[0].mxu0
    %v1332 = vadd.f32 0.0, %v1331
    %v1333 = vpop.f32.mrb[0].mxu0
    %v1334 = vpop.f32.mrb[0].mxu0
    %v1335 = vadd.f32 0.0, %v1334
    %v1336 = vpop.f32.mrb[0].mxu0
    %1337 = vmatprep.mubr.bf16.mxu0 0
    %1338 = vmatmul.mubr.bf16.gmra.mrb[0].mxu0 %v1165
    %v1339 = vpop.f32.mrb[0].mxu0
    %v1340 = vadd.f32 0.0, %v1339
    %v1341 = vpop.f32.mrb[0].mxu0
    %v1342 = vpop.f32.mrb[0].mxu0
    %v1343 = vadd.f32 0.0, %v1342
    %v1344 = vpop.f32.mrb[0].mxu0
    %1345 = vmatprep.mubr.bf16.mxu0 0
    %1346 = vmatmul.mubr.bf16.gmra.mrb[0].mxu0 %v1166
    %v1347 = vpop.f32.mrb[0].mxu0
    %v1348 = vadd.f32 0.0, %v1347
    %v1349 = vpop.f32.mrb[0].mxu0
    %v1350 = vpop.f32.mrb[0].mxu0
    %v1351 = vadd.f32 0.0, %v1350
    %v1352 = vpop.f32.mrb[0].mxu0
    %1353 = vmatprep.mubr.bf16.mxu0 0
    %1354 = vmatmul.mubr.bf16.gmra.mrb[0].mxu0 %v1167
    %v1355 = vpop.f32.mrb[0].mxu0
    %v1356 = vadd.f32 0.0, %v1355
    %v1357 = vpop.f32.mrb[0].mxu0
    %v1358 = vpop.f32.mrb[0].mxu0
    %v1359 = vadd.f32 0.0, %v1358
    %v1360 = vpop.f32.mrb[0].mxu0
    %1361 = vmatprep.mubr.bf16.mxu0 0
    %1362 = vmatmul.mubr.bf16.gmra.mrb[0].mxu0 %v1168
    %v1363 = vpop.f32.mrb[0].mxu0
    %v1364 = vadd.f32 0.0, %v1363
    %v1365 = vpop.f32.mrb[0].mxu0
    %v1366 = vpop.f32.mrb[0].mxu0
    %v1367 = vadd.f32 0.0, %v1366
    %v1368 = vpop.f32.mrb[0].mxu0
    %1369 = vmatprep.mubr.bf16.mxu0 0
    %1370 = vmatmul.mubr.bf16.gmra.mrb[0].mxu0 %v1169
    %v1371 = vpop.f32.mrb[0].mxu0
    %v1372 = vadd.f32 0.0, %v1371
    %v1373 = vpop.f32.mrb[0].mxu0
    %v1374 = vpop.f32.mrb[0].mxu0
    %v1375 = vadd.f32 0.0, %v1374
    %v1376 = vpop.f32.mrb[0].mxu0
    %1377 = vmatprep.mubr.bf16.mxu0 0
    %1378 = vmatmul.mubr.bf16.gmra.mrb[0].mxu0 %v1170
    %v1379 = vpop.f32.mrb[0].mxu0
    %v1380 = vadd.f32 0.0, %v1379
    %v1381 = vpop.f32.mrb[0].mxu0
    %v1382 = vpop.f32.mrb[0].mxu0
    %v1383 = vadd.f32 0.0, %v1382
    %v1384 = vpop.f32.mrb[0].mxu0
    %1385 = vmatprep.mubr.bf16.mxu0 0
    %1386 = vmatmul.mubr.bf16.gmra.mrb[0].mxu0 %v1171
    %v1387 = vpop.f32.mrb[0].mxu0
    %v1388 = vadd.f32 0.0, %v1387
    %v1389 = vpop.f32.mrb[0].mxu0
    %v1390 = vpop.f32.mrb[0].mxu0
    %v1391 = vadd.f32 0.0, %v1390
    %v1392 = vpop.f32.mrb[0].mxu0
    %1393 = vmatprep.mubr.bf16.mxu0 0
    %1394 = vmatmul.mubr.bf16.gmra.mrb[0].mxu0 %v1172
    %v1395 = vpop.f32.mrb[0].mxu0
    %v1396 = vadd.f32 0.0, %v1395
    %v1397 = vpop.f32.mrb[0].mxu0
    %v1398 = vpop.f32.mrb[0].mxu0
    %v1399 = vadd.f32 0.0, %v1398
    %v1400 = vpop.f32.mrb[0].mxu0
    %1401 = vmatprep.mubr.bf16.mxu0 0
    %1402 = vmatmul.mubr.bf16.gmra.mrb[0].mxu0 %v1173
    %v1403 = vpop.f32.mrb[0].mxu0
    %v1404 = vadd.f32 0.0, %v1403
    %v1405 = vpop.f32.mrb[0].mxu0
    %v1406 = vpop.f32.mrb[0].mxu0
    %v1407 = vadd.f32 0.0, %v1406
    %v1408 = vpop.f32.mrb[0].mxu0
    %1409 = vmatprep.mubr.bf16.mxu0 0
    %1410 = vmatmul.mubr.bf16.gmra.mrb[0].mxu0 %v1174
    %v1411 = vpop.f32.mrb[0].mxu0
    %v1412 = vadd.f32 0.0, %v1411
    %v1413 = vpop.f32.mrb[0].mxu0
    %v1414 = vpop.f32.mrb[0].mxu0
    %v1415 = vadd.f32 0.0, %v1414
    %v1416 = vpop.f32.mrb[0].mxu0
    %1417 = vmatprep.mubr.bf16.mxu0 0
    %1418 = vmatmul.mubr.bf16.gmra.mrb[0].mxu0 %v1175
    %v1419 = vpop.f32.mrb[0].mxu0
    %v1420 = vadd.f32 0.0, %v1419
    %v1421 = vpop.f32.mrb[0].mxu0
    %v1422 = vpop.f32.mrb[0].mxu0
    %v1423 = vadd.f32 0.0, %v1422
    %v1424 = vpop.f32.mrb[0].mxu0
    %1425 = vmatprep.mubr.bf16.mxu0 0
    %1426 = vmatmul.mubr.bf16.gmra.mrb[0].mxu0 %v1176
    %v1427 = vpop.f32.mrb[0].mxu0
    %v1428 = vadd.f32 0.0, %v1427
    %v1429 = vpop.f32.mrb[0].mxu0
    %v1430 = vpop.f32.mrb[0].mxu0
    %v1431 = vadd.f32 0.0, %v1430
    %v1432 = vpop.f32.mrb[0].mxu0
    %1433 = vmatprep.mubr.bf16.mxu0 0
    %1434 = vmatmul.mubr.bf16.gmra.mrb[0].mxu0 %v1177
    %v1435 = vpop.f32.mrb[0].mxu0
    %v1436 = vadd.f32 0.0, %v1435
    %v1437 = vpop.f32.mrb[0].mxu0
    %v1438 = vpop.f32.mrb[0].mxu0
    %v1439 = vadd.f32 0.0, %v1438
    %v1440 = vpop.f32.mrb[0].mxu0
    %1441 = vmatprep.mubr.bf16.mxu0 0
    %1442 = vmatmul.mubr.bf16.gmra.mrb[0].mxu0 %v1178
    %v1443 = vpop.f32.mrb[0].mxu0
    %v1444 = vadd.f32 0.0, %v1443
    %v1445 = vpop.f32.mrb[0].mxu0
    %v1446 = vpop.f32.mrb[0].mxu0
    %v1447 = vadd.f32 0.0, %v1446
    %v1448 = vpop.f32.mrb[0].mxu0
    %1449 = vmatprep.mubr.bf16.mxu0 0
    %1450 = vmatmul.mubr.bf16.gmra.mrb[0].mxu0 %v1179
    %v1451 = vpop.f32.mrb[0].mxu0
    %v1452 = vadd.f32 0.0, %v1451
    %v1453 = vpop.f32.mrb[0].mxu0
    %v1454 = vpop.f32.mrb[0].mxu0
    %v1455 = vadd.f32 0.0, %v1454
    %v1456 = vpop.f32.mrb[0].mxu0
    %1457 = vmatprep.mubr.bf16.mxu0 0
    %1458 = vmatmul.mubr.bf16.gmra.mrb[0].mxu0 %v1180
    %v1459 = vpop.f32.mrb[0].mxu0
    %v1460 = vadd.f32 0.0, %v1459
    %v1461 = vpop.f32.mrb[0].mxu0
    %v1462 = vpop.f32.mrb[0].mxu0
    %v1463 = vadd.f32 0.0, %v1462
    %v1464 = vpop.f32.mrb[0].mxu0
    %1465 = vmatprep.mubr.bf16.mxu0 0
    %1466 = vmatmul.mubr.bf16.gmra.mrb[0].mxu0 %v1181
    %v1467 = vpop.f32.mrb[0].mxu0
    %v1468 = vadd.f32 0.0, %v1467
    %v1469 = vpop.f32.mrb[0].mxu0
    %v1470 = vpop.f32.mrb[0].mxu0
    %v1471 = vadd.f32 0.0, %v1470
    %v1472 = vpop.f32.mrb[0].mxu0
    %1473 = vmatprep.mubr.bf16.mxu0 0
    %1474 = vmatmul.mubr.bf16.gmra.mrb[0].mxu0 %v1182
    %v1475 = vpop.f32.mrb[0].mxu0
    %v1476 = vadd.f32 0.0, %v1475
    %v1477 = vpop.f32.mrb[0].mxu0
    %v1478 = vpop.f32.mrb[0].mxu0
    %v1479 = vadd.f32 0.0, %v1478
    %v1480 = vpop.f32.mrb[0].mxu0
    %1481 = vmatprep.mubr.bf16.mxu0 0
    %1482 = vmatmul.mubr.bf16.gmra.mrb[0].mxu0 %v1183
    %v1483 = vpop.f32.mrb[0].mxu0
    %v1484 = vadd.f32 0.0, %v1483
    %v1485 = vpop.f32.mrb[0].mxu0
    %v1486 = vpop.f32.mrb[0].mxu0
    %v1487 = vadd.f32 0.0, %v1486
    %v1488 = vpop.f32.mrb[0].mxu0
    %1489 = vmatprep.mubr.bf16.mxu0 0
    %1490 = vmatmul.mubr.bf16.gmra.mrb[0].mxu0 %v1184
    %v1491 = vpop.f32.mrb[0].mxu0
    %v1492 = vadd.f32 0.0, %v1491
    %v1493 = vpop.f32.mrb[0].mxu0
    %v1494 = vpop.f32.mrb[0].mxu0
    %v1495 = vadd.f32 0.0, %v1494
    %v1496 = vpop.f32.mrb[0].mxu0
    %1497 = vmatprep.mubr.bf16.mxu0 0
    %1498 = vmatmul.mubr.bf16.gmra.mrb[0].mxu0 %v1185
    %v1499 = vpop.f32.mrb[0].mxu0
    %v1500 = vadd.f32 0.0, %v1499
    %v1501 = vpop.f32.mrb[0].mxu0
    %v1502 = vpop.f32.mrb[0].mxu0
    %v1503 = vadd.f32 0.0, %v1502
    %v1504 = vpop.f32.mrb[0].mxu0
    %1505 = vmatprep.mubr.bf16.mxu0 0
    %1506 = vmatmul.mubr.bf16.gmra.mrb[0].mxu0 %v1186
    %v1507 = vpop.f32.mrb[0].mxu0
    %v1508 = vadd.f32 0.0, %v1507
    %v1509 = vpop.f32.mrb[0].mxu0
    %v1510 = vpop.f32.mrb[0].mxu0
    %v1511 = vadd.f32 0.0, %v1510
    %v1512 = vpop.f32.mrb[0].mxu0
    %1513 = vmatprep.mubr.bf16.mxu0 0
    %1514 = vmatmul.mubr.bf16.gmra.mrb[0].mxu0 %v1187
    %v1515 = vpop.f32.mrb[0].mxu0
    %v1516 = vadd.f32 0.0, %v1515
    %v1517 = vpop.f32.mrb[0].mxu0
    %v1518 = vpop.f32.mrb[0].mxu0
    %v1519 = vadd.f32 0.0, %v1518
    %v1520 = vpop.f32.mrb[0].mxu0
    %1521 = vmatprep.mubr.bf16.mxu0 0
    %1522 = vmatmul.mubr.bf16.gmra.mrb[0].mxu0 %v1188
    %v1523 = vpop.f32.mrb[0].mxu0
    %v1524 = vadd.f32 0.0, %v1523
    %v1525 = vpop.f32.mrb[0].mxu0
    %v1526 = vpop.f32.mrb[0].mxu0
    %v1527 = vadd.f32 0.0, %v1526
    %v1528 = vpop.f32.mrb[0].mxu0
    %1529 = vmatprep.mubr.bf16.mxu0 0
    %1530 = vmatmul.mubr.bf16.gmra.mrb[0].mxu0 %v1189
    %v1531 = vpop.f32.mrb[0].mxu0
    %v1532 = vadd.f32 0.0, %v1531
    %v1533 = vpop.f32.mrb[0].mxu0
    %v1534 = vpop.f32.mrb[0].mxu0
    %v1535 = vadd.f32 0.0, %v1534
    %v1536 = vpop.f32.mrb[0].mxu0
    %1537 = vmatprep.mubr.bf16.mxu0 0
    %1538 = vmatmul.mubr.bf16.gmra.mrb[0].mxu0 %v1190
    %v1539 = vpop.f32.mrb[0].mxu0
    %v1540 = vadd.f32 0.0, %v1539
    %v1541 = vpop.f32.mrb[0].mxu0
    %v1542 = vpop.f32.mrb[0].mxu0
    %v1543 = vadd.f32 0.0, %v1542
    %v1544 = vpop.f32.mrb[0].mxu0
    %1545 = vmatprep.mubr.bf16.mxu0 0
    %1546 = vmatmul.mubr.bf16.gmra.mrb[0].mxu0 %v1191
    %v1547 = vpop.f32.mrb[0].mxu0
    %v1548 = vadd.f32 0.0, %v1547
    %v1549 = vpop.f32.mrb[0].mxu0
    %v1550 = vpop.f32.mrb[0].mxu0
    %v1551 = vadd.f32 0.0, %v1550
    %v1552 = vpop.f32.mrb[0].mxu0
    %1553 = vmatprep.mubr.bf16.mxu0 0
    %1554 = vmatmul.mubr.bf16.gmra.mrb[0].mxu0 %v1192
    %v1555 = vpop.f32.mrb[0].mxu0
    %v1556 = vadd.f32 0.0, %v1555
    %v1557 = vpop.f32.mrb[0].mxu0
    %v1558 = vpop.f32.mrb[0].mxu0
    %v1559 = vadd.f32 0.0, %v1558
    %v1560 = vpop.f32.mrb[0].mxu0
    %1561 = vdwg.mxu0
    %1562 = vst [vmem:[#allocation11] sm:$0xff] %v1308
    %1563 = vst [vmem:[#allocation11 + $0x8] sm:$0xff] %v1311
    %1564 = vst [vmem:[#allocation11 + $0x10] sm:$0xff] %v1316
    %1565 = vst [vmem:[#allocation11 + $0x18] sm:$0xff] %v1319
    %1566 = vst [vmem:[#allocation11 + $0x20] sm:$0xff] %v1324
    %1567 = vst [vmem:[#allocation11 + $0x28] sm:$0xff] %v1327
    %1568 = vst [vmem:[#allocation11 + $0x30] sm:$0xff] %v1332
    %1569 = vst [vmem:[#allocation11 + $0x38] sm:$0xff] %v1335
    %1570 = vst [vmem:[#allocation11 + $0x40] sm:$0xff] %v1340
    %1571 = vst [vmem:[#allocation11 + $0x48] sm:$0xff] %v1343
    %1572 = vst [vmem:[#allocation11 + $0x50] sm:$0xff] %v1348
    %1573 = vst [vmem:[#allocation11 + $0x58] sm:$0xff] %v1351
    %1574 = vst [vmem:[#allocation11 + $0x60] sm:$0xff] %v1356
    %1575 = vst [vmem:[#allocation11 + $0x68] sm:$0xff] %v1359
    %1576 = vst [vmem:[#allocation11 + $0x70] sm:$0xff] %v1364
    %1577 = vst [vmem:[#allocation11 + $0x78] sm:$0xff] %v1367
    %1578 = vst [vmem:[#allocation11 + $0x80] sm:$0xff] %v1372
    %1579 = vst [vmem:[#allocation11 + $0x88] sm:$0xff] %v1375
    %1580 = vst [vmem:[#allocation11 + $0x90] sm:$0xff] %v1380
    %1581 = vst [vmem:[#allocation11 + $0x98] sm:$0xff] %v1383
    %1582 = vst [vmem:[#allocation11 + $0xa0] sm:$0xff] %v1388
    %1583 = vst [vmem:[#allocation11 + $0xa8] sm:$0xff] %v1391
    %1584 = vst [vmem:[#allocation11 + $0xb0] sm:$0xff] %v1396
    %1585 = vst [vmem:[#allocation11 + $0xb8] sm:$0xff] %v1399
    %1586 = vst [vmem:[#allocation11 + $0xc0] sm:$0xff] %v1404
    %1587 = vst [vmem:[#allocation11 + $0xc8] sm:$0xff] %v1407
    %1588 = vst [vmem:[#allocation11 + $0xd0] sm:$0xff] %v1412
    %1589 = vst [vmem:[#allocation11 + $0xd8] sm:$0xff] %v1415
    %1590 = vst [vmem:[#allocation11 + $0xe0] sm:$0xff] %v1420
    %1591 = vst [vmem:[#allocation11 + $0xe8] sm:$0xff] %v1423
    %1592 = vst [vmem:[#allocation11 + $0xf0] sm:$0xff] %v1428
    %1593 = vst [vmem:[#allocation11 + $0xf8] sm:$0xff] %v1431
    %1594 = vst [vmem:[#allocation11 + $0x100] sm:$0xff] %v1436
    %1595 = vst [vmem:[#allocation11 + $0x108] sm:$0xff] %v1439
    %1596 = vst [vmem:[#allocation11 + $0x110] sm:$0xff] %v1444
    %1597 = vst [vmem:[#allocation11 + $0x118] sm:$0xff] %v1447
    %1598 = vst [vmem:[#allocation11 + $0x120] sm:$0xff] %v1452
    %1599 = vst [vmem:[#allocation11 + $0x128] sm:$0xff] %v1455
    %1600 = vst [vmem:[#allocation11 + $0x130] sm:$0xff] %v1460
    %1601 = vst [vmem:[#allocation11 + $0x138] sm:$0xff] %v1463
    %1602 = vst [vmem:[#allocation11 + $0x140] sm:$0xff] %v1468
    %1603 = vst [vmem:[#allocation11 + $0x148] sm:$0xff] %v1471
    %1604 = vst [vmem:[#allocation11 + $0x150] sm:$0xff] %v1476
    %1605 = vst [vmem:[#allocation11 + $0x158] sm:$0xff] %v1479
    %1606 = vst [vmem:[#allocation11 + $0x160] sm:$0xff] %v1484
    %1607 = vst [vmem:[#allocation11 + $0x168] sm:$0xff] %v1487
    %1608 = vst [vmem:[#allocation11 + $0x170] sm:$0xff] %v1492
    %1609 = vst [vmem:[#allocation11 + $0x178] sm:$0xff] %v1495
    %1610 = vst [vmem:[#allocation11 + $0x180] sm:$0xff] %v1500
    %1611 = vst [vmem:[#allocation11 + $0x188] sm:$0xff] %v1503
    %1612 = vst [vmem:[#allocation11 + $0x190] sm:$0xff] %v1508
    %1613 = vst [vmem:[#allocation11 + $0x198] sm:$0xff] %v1511
    %1614 = vst [vmem:[#allocation11 + $0x1a0] sm:$0xff] %v1516
    %1615 = vst [vmem:[#allocation11 + $0x1a8] sm:$0xff] %v1519
    %1616 = vst [vmem:[#allocation11 + $0x1b0] sm:$0xff] %v1524
    %1617 = vst [vmem:[#allocation11 + $0x1b8] sm:$0xff] %v1527
    %1618 = vst [vmem:[#allocation11 + $0x1c0] sm:$0xff] %v1532
    %1619 = vst [vmem:[#allocation11 + $0x1c8] sm:$0xff] %v1535
    %1620 = vst [vmem:[#allocation11 + $0x1d0] sm:$0xff] %v1540
    %1621 = vst [vmem:[#allocation11 + $0x1d8] sm:$0xff] %v1543
    %1622 = vst [vmem:[#allocation11 + $0x1e0] sm:$0xff] %v1548
    %1623 = vst [vmem:[#allocation11 + $0x1e8] sm:$0xff] %v1551
    %1624 = vst [vmem:[#allocation11 + $0x1f0] sm:$0xff] %v1556
    %1625 = vst [vmem:[#allocation11 + $0x1f8] sm:$0xff] %v1559
    %v1626 = vadd.f32 %v1308, %v1311
    %v1627 = vadd.f32 %v1626, %v1316
    %v1628 = vadd.f32 %v1627, %v1319
    %v1629 = vadd.f32 %v1628, %v1324
    %v1630 = vadd.f32 %v1629, %v1327
    %v1631 = vadd.f32 %v1630, %v1332
    %v1632 = vadd.f32 %v1631, %v1335
    %v1633 = vadd.f32 %v1632, %v1340
    %v1634 = vadd.f32 %v1633, %v1343
    %v1635 = vadd.f32 %v1634, %v1348
    %v1636 = vadd.f32 %v1635, %v1351
    %v1637 = vadd.f32 %v1636, %v1356
    %v1638 = vadd.f32 %v1637, %v1359
    %v1639 = vadd.f32 %v1638, %v1364
    %v1640 = vadd.f32 %v1639, %v1367
    %v1641 = vadd.f32 %v1640, %v1372
    %v1642 = vadd.f32 %v1641, %v1375
    %v1643 = vadd.f32 %v1642, %v1380
    %v1644 = vadd.f32 %v1643, %v1383
    %v1645 = vadd.f32 %v1644, %v1388
    %v1646 = vadd.f32 %v1645, %v1391
    %v1647 = vadd.f32 %v1646, %v1396
    %v1648 = vadd.f32 %v1647, %v1399
    %v1649 = vadd.f32 %v1648, %v1404
    %v1650 = vadd.f32 %v1649, %v1407
    %v1651 = vadd.f32 %v1650, %v1412
    %v1652 = vadd.f32 %v1651, %v1415
    %v1653 = vadd.f32 %v1652, %v1420
    %v1654 = vadd.f32 %v1653, %v1423
    %v1655 = vadd.f32 %v1654, %v1428
    %v1656 = vadd.f32 %v1655, %v1431
    %v1657 = vadd.f32 %v1656, %v1436
    %v1658 = vadd.f32 %v1657, %v1439
    %v1659 = vadd.f32 %v1658, %v1444
    %v1660 = vadd.f32 %v1659, %v1447
    %v1661 = vadd.f32 %v1660, %v1452
    %v1662 = vadd.f32 %v1661, %v1455
    %v1663 = vadd.f32 %v1662, %v1460
    %v1664 = vadd.f32 %v1663, %v1463
    %v1665 = vadd.f32 %v1664, %v1468
    %v1666 = vadd.f32 %v1665, %v1471
    %v1667 = vadd.f32 %v1666, %v1476
    %v1668 = vadd.f32 %v1667, %v1479
    %v1669 = vadd.f32 %v1668, %v1484
    %v1670 = vadd.f32 %v1669, %v1487
    %v1671 = vadd.f32 %v1670, %v1492
    %v1672 = vadd.f32 %v1671, %v1495
    %v1673 = vadd.f32 %v1672, %v1500
    %v1674 = vadd.f32 %v1673, %v1503
    %v1675 = vadd.f32 %v1674, %v1508
    %v1676 = vadd.f32 %v1675, %v1511
    %v1677 = vadd.f32 %v1676, %v1516
    %v1678 = vadd.f32 %v1677, %v1519
    %v1679 = vadd.f32 %v1678, %v1524
    %v1680 = vadd.f32 %v1679, %v1527
    %v1681 = vadd.f32 %v1680, %v1532
    %v1682 = vadd.f32 %v1681, %v1535
    %v1683 = vadd.f32 %v1682, %v1540
    %v1684 = vadd.f32 %v1683, %v1543
    %v1685 = vadd.f32 %v1684, %v1548
    %v1686 = vadd.f32 %v1685, %v1551
    %v1687 = vadd.f32 %v1686, %v1556
    %v1688 = vadd.f32 %v1687, %v1559
    %v1689 = vrot.slane %v1688, 4
    %v1690 = vadd.f32 %v1688, %v1689
    %v1691 = vrot.slane %v1690, 2
    %v1692 = vadd.f32 %v1690, %v1691
    %v1693 = vrot.slane %v1692, 1
    %v1694 = vadd.f32 %v1692, %v1693
    %v1695 = vmul.f32 %v1308, %v1308
    %v1696 = vmul.f32 %v1311, %v1311
    %v1697 = vmul.f32 %v1316, %v1316
    %v1698 = vmul.f32 %v1319, %v1319
    %v1699 = vmul.f32 %v1324, %v1324
    %v1700 = vmul.f32 %v1327, %v1327
    %v1701 = vmul.f32 %v1332, %v1332
    %v1702 = vmul.f32 %v1335, %v1335
    %v1703 = vmul.f32 %v1340, %v1340
    %v1704 = vmul.f32 %v1343, %v1343
    %v1705 = vmul.f32 %v1348, %v1348
    %v1706 = vmul.f32 %v1351, %v1351
    %v1707 = vmul.f32 %v1356, %v1356
    %v1708 = vmul.f32 %v1359, %v1359
    %v1709 = vmul.f32 %v1364, %v1364
    %v1710 = vmul.f32 %v1367, %v1367
    %v1711 = vmul.f32 %v1372, %v1372
    %v1712 = vmul.f32 %v1375, %v1375
    %v1713 = vmul.f32 %v1380, %v1380
    %v1714 = vmul.f32 %v1383, %v1383
    %v1715 = vmul.f32 %v1388, %v1388
    %v1716 = vmul.f32 %v1391, %v1391
    %v1717 = vmul.f32 %v1396, %v1396
    %v1718 = vmul.f32 %v1399, %v1399
    %v1719 = vmul.f32 %v1404, %v1404
    %v1720 = vmul.f32 %v1407, %v1407
    %v1721 = vmul.f32 %v1412, %v1412
    %v1722 = vmul.f32 %v1415, %v1415
    %v1723 = vmul.f32 %v1420, %v1420
    %v1724 = vmul.f32 %v1423, %v1423
    %v1725 = vmul.f32 %v1428, %v1428
    %v1726 = vmul.f32 %v1431, %v1431
    %v1727 = vmul.f32 %v1436, %v1436
    %v1728 = vmul.f32 %v1439, %v1439
    %v1729 = vmul.f32 %v1444, %v1444
    %v1730 = vmul.f32 %v1447, %v1447
    %v1731 = vmul.f32 %v1452, %v1452
    %v1732 = vmul.f32 %v1455, %v1455
    %v1733 = vmul.f32 %v1460, %v1460
    %v1734 = vmul.f32 %v1463, %v1463
    %v1735 = vmul.f32 %v1468, %v1468
    %v1736 = vmul.f32 %v1471, %v1471
    %v1737 = vmul.f32 %v1476, %v1476
    %v1738 = vmul.f32 %v1479, %v1479
    %v1739 = vmul.f32 %v1484, %v1484
    %v1740 = vmul.f32 %v1487, %v1487
    %v1741 = vmul.f32 %v1492, %v1492
    %v1742 = vmul.f32 %v1495, %v1495
    %v1743 = vmul.f32 %v1500, %v1500
    %v1744 = vmul.f32 %v1503, %v1503
    %v1745 = vmul.f32 %v1508, %v1508
    %v1746 = vmul.f32 %v1511, %v1511
    %v1747 = vmul.f32 %v1516, %v1516
    %v1748 = vmul.f32 %v1519, %v1519
    %v1749 = vmul.f32 %v1524, %v1524
    %v1750 = vmul.f32 %v1527, %v1527
    %v1751 = vmul.f32 %v1532, %v1532
    %v1752 = vmul.f32 %v1535, %v1535
    %v1753 = vmul.f32 %v1540, %v1540
    %v1754 = vmul.f32 %v1543, %v1543
    %v1755 = vmul.f32 %v1548, %v1548
    %v1756 = vmul.f32 %v1551, %v1551
    %v1757 = vmul.f32 %v1556, %v1556
    %v1758 = vmul.f32 %v1559, %v1559
    %v1759 = vadd.f32 %v1695, %v1696
    %v1760 = vadd.f32 %v1759, %v1697
    %v1761 = vadd.f32 %v1760, %v1698
    %v1762 = vadd.f32 %v1761, %v1699
    %v1763 = vadd.f32 %v1762, %v1700
    %v1764 = vadd.f32 %v1763, %v1701
    %v1765 = vadd.f32 %v1764, %v1702
    %v1766 = vadd.f32 %v1765, %v1703
    %v1767 = vadd.f32 %v1766, %v1704
    %v1768 = vadd.f32 %v1767, %v1705
    %v1769 = vadd.f32 %v1768, %v1706
    %v1770 = vadd.f32 %v1769, %v1707
    %v1771 = vadd.f32 %v1770, %v1708
    %v1772 = vadd.f32 %v1771, %v1709
    %v1773 = vadd.f32 %v1772, %v1710
    %v1774 = vadd.f32 %v1773, %v1711
    %v1775 = vadd.f32 %v1774, %v1712
    %v1776 = vadd.f32 %v1775, %v1713
    %v1777 = vadd.f32 %v1776, %v1714
    %v1778 = vadd.f32 %v1777, %v1715
    %v1779 = vadd.f32 %v1778, %v1716
    %v1780 = vadd.f32 %v1779, %v1717
    %v1781 = vadd.f32 %v1780, %v1718
    %v1782 = vadd.f32 %v1781, %v1719
    %v1783 = vadd.f32 %v1782, %v1720
    %v1784 = vadd.f32 %v1783, %v1721
    %v1785 = vadd.f32 %v1784, %v1722
    %v1786 = vadd.f32 %v1785, %v1723
    %v1787 = vadd.f32 %v1786, %v1724
    %v1788 = vadd.f32 %v1787, %v1725
    %v1789 = vadd.f32 %v1788, %v1726
    %v1790 = vadd.f32 %v1789, %v1727
    %v1791 = vadd.f32 %v1790, %v1728
    %v1792 = vadd.f32 %v1791, %v1729
    %v1793 = vadd.f32 %v1792, %v1730
    %v1794 = vadd.f32 %v1793, %v1731
    %v1795 = vadd.f32 %v1794, %v1732
    %v1796 = vadd.f32 %v1795, %v1733
    %v1797 = vadd.f32 %v1796, %v1734
    %v1798 = vadd.f32 %v1797, %v1735
    %v1799 = vadd.f32 %v1798, %v1736
    %v1800 = vadd.f32 %v1799, %v1737
    %v1801 = vadd.f32 %v1800, %v1738
    %v1802 = vadd.f32 %v1801, %v1739
    %v1803 = vadd.f32 %v1802, %v1740
    %v1804 = vadd.f32 %v1803, %v1741
    %v1805 = vadd.f32 %v1804, %v1742
    %v1806 = vadd.f32 %v1805, %v1743
    %v1807 = vadd.f32 %v1806, %v1744
    %v1808 = vadd.f32 %v1807, %v1745
    %v1809 = vadd.f32 %v1808, %v1746
    %v1810 = vadd.f32 %v1809, %v1747
    %v1811 = vadd.f32 %v1810, %v1748
    %v1812 = vadd.f32 %v1811, %v1749
    %v1813 = vadd.f32 %v1812, %v1750
    %v1814 = vadd.f32 %v1813, %v1751
    %v1815 = vadd.f32 %v1814, %v1752
    %v1816 = vadd.f32 %v1815, %v1753
    %v1817 = vadd.f32 %v1816, %v1754
    %v1818 = vadd.f32 %v1817, %v1755
    %v1819 = vadd.f32 %v1818, %v1756
    %v1820 = vadd.f32 %v1819, %v1757
    %v1821 = vadd.f32 %v1820, %v1758
    %v1822 = vrot.slane %v1821, 4
    %v1823 = vadd.f32 %v1821, %v1822
    %v1824 = vrot.slane %v1823, 2
    %v1825 = vadd.f32 %v1823, %v1824
    %v1826 = vrot.slane %v1825, 1
    %v1827 = vadd.f32 %v1825, %v1826
    %vm1828 = vcmask 1040384
    %v1829 = vsel %vm1828, %v819, %v952
    %vm1830 = vcmask 1041408
    %v1831 = vsel %vm1830, %v1829, %v1694
    %vm1832 = vcmask 1042432
    %v1833 = vsel %vm1832, %v1831, %v1827
    %vm1834 = vcmask 1043456
    %v1835 = vsel %vm1834, %v1833, 0.0
    %vm1836 = vcmask 1044480
    %v1837 = vsel %vm1836, %v1835, 0.0
    %vm1838 = vcmask 1045504
    %v1839 = vsel %vm1838, %v1837, 0.0
    %vm1840 = vcmask 1046528
    %v1841 = vsel %vm1840, %v1839, 0.0
    %1842 = vst [vmem:[#allocation13] sm:$0xff] %v1841
    // Predicated region
    $region34: #{tpu_custom_call.1} parent=1 // pred_check
      _
    $region35: #{tpu_custom_call.1} parent=1 // pred_check_branch
      %1844 = sbr.rel (0) target = $region37
    $region36: #{tpu_custom_call.1} parent=1 // pred_region
      %s1846 = ssub.s32 8192, 8192
      %1847 = vsyncadd [#allocation4], %s1846
      %s1848 = sshll.u32 [#allocation10], 4
      %s1849 = int_to_ptr.vmem [resolvable:$true] %s1848
      %1854 = dma.vmem_to_hbm [thread:$0]  %s1849, 8192, %s4, [#allocation4], 128, 128, 8
    $region37: #{tpu_custom_call.1} parent=1 // pred_fallthru
      _
    // Predicated region
    $region38: #{tpu_custom_call.1} parent=1 // pred_check
      _
    $region39: #{tpu_custom_call.1} parent=1 // pred_check_branch
      %1856 = sbr.rel (0) target = $region41
    $region40: #{tpu_custom_call.1} parent=1 // pred_region
      %s1858 = ssub.s32 8192, 8192
      %1859 = vsyncadd [#allocation12], %s1858
      %s1860 = sshll.u32 [#allocation11], 4
      %s1861 = int_to_ptr.vmem [resolvable:$true] %s1860
      %1866 = dma.vmem_to_hbm [thread:$0]  %s1861, 8192, %s5, [#allocation12], 128, 128, 8
    $region41: #{tpu_custom_call.1} parent=1 // pred_fallthru
      _
    // Predicated region
    $region42: #{tpu_custom_call.1} parent=1 // pred_check
      _
    $region43: #{tpu_custom_call.1} parent=1 // pred_check_branch
      %1868 = sbr.rel (0) target = $region45
    $region44: #{tpu_custom_call.1} parent=1 // pred_region
      %s1870 = ssub.s32 128, 128
      %1871 = vsyncadd [#allocation12], %s1870
      %s1873 = sshll.u32 [#allocation13], 4
      %s1874 = int_to_ptr.vmem [resolvable:$true] %s1873
      %1876 = dma.vmem_to_hbm [thread:$0]  %s1874, 128, %s6, [#allocation12]
    $region45: #{tpu_custom_call.1} parent=1 // pred_fallthru
      _
    // Predicated region
    $region46: #{tpu_custom_call.1} parent=1 // pred_check
      _
    $region47: #{tpu_custom_call.1} parent=1 // pred_check_branch
      %1878 = sbr.rel (0) target = $region49
    $region48: #{tpu_custom_call.1} parent=1 // pred_region
      %1879 = dma.done [#allocation4], 8192
    $region49: #{tpu_custom_call.1} parent=1 // pred_fallthru
      _
    // Predicated region
    $region50: #{tpu_custom_call.1} parent=1 // pred_check
      _
    $region51: #{tpu_custom_call.1} parent=1 // pred_check_branch
      %1881 = sbr.rel (0) target = $region53
    $region52: #{tpu_custom_call.1} parent=1 // pred_region
      %1882 = dma.done [#allocation12], 8192
    $region53: #{tpu_custom_call.1} parent=1 // pred_fallthru
      _
    // Predicated region
    $region54: #{tpu_custom_call.1} parent=1 // pred_check
      _
    $region55: #{tpu_custom_call.1} parent=1 // pred_check_branch
      %1884 = sbr.rel (0) target = $region57
    $region56: #{tpu_custom_call.1} parent=1 // pred_region
      %1885 = dma.done [#allocation12], 128
    $region57: #{tpu_custom_call.1} parent=1 // pred_fallthru
      _
    %1886 = vsyncpa [#allocation3], 1
    %1887 = vsyncpa [#allocation6], 1
    %1888 = vsyncpa [#allocation9], 1
    %1889 = vsyncpa [#allocation4], 1
    %1890 = vsyncpa [#allocation12], 1

</llo_original>
